<compile_context>
chip_gen: v5e
topology: v5e:2x2
jax: 0.10.0
libtpu: 0.0.40
codegen_flags: <defaults>
</compile_context>

<pallas_src>
import functools

import numpy as np

import jax
import jax.numpy as jnp
from jax.experimental import pallas as pl
from jax.experimental.pallas import tpu as pltpu


def _banded_weight(w_hwio, width):
    """Toeplitz-expand HWIO 3x3 conv weights into a (3*W*Cin, W*Cout) band matrix.

    B[kh*W*Cin + wi*Cin + ci, wo*Cout + co] = w[kh, wi - wo + 1, ci, co]
    when 0 <= wi - wo + 1 < 3, else 0.  The zero band realizes padding=1 along
    W, so the kernel only needs H-direction shifts.  One-time host-side repack.
    """
    KH, KW, Cin, Cout = w_hwio.shape
    kw = np.arange(KW)[:, None, None]
    wi = np.arange(width)[None, :, None]
    wo = np.arange(width)[None, None, :]
    sel = (wi == wo + kw - 1).astype(np.float32)            # (KW, W_in, W_out)
    band = jnp.einsum('kuv,hkio->huivo', jnp.asarray(sel),
                      w_hwio.astype(jnp.float32))           # (KH, W_in, Cin, W_out, Cout)
    return band.reshape(KH * width * Cin, width * Cout)


def _basic_block_kernel(x_ref, b1_ref, gb1_ref, b2_ref, gb2_ref, o_ref,
                        *, n, h, w, c, eps):
    """Fused conv1+bn1+relu -> conv2+bn2 -> +x -> relu, all lane-dense.

    x_ref:   (N*H, W*C)   f32, lane-dense input (channels folded into lanes)
    b*_ref:  (3*W*C, W*C) bf16, Toeplitz-expanded conv weights (3 kh bands)
    gb*_ref: (2, C)       f32, row 0 = BN gamma, row 1 = BN beta
    o_ref:   (N*H, W*C)   f32, lane-dense output
    """
    NH = n * h
    WC = w * c
    inv_count = 1.0 / float(n * h * w)

    # Image-boundary masks for H shifts (rolls wrap between images / globally;
    # those rows are exactly the zero-padded ones, so mask them out).
    row = jax.lax.broadcasted_iota(jnp.int32, (NH, 1), 0)
    rmod = row % h
    not_first = rmod != 0            # valid when pulling from the row above (kh=0)
    not_last = rmod != (h - 1)       # valid when pulling from the row below (kh=2)

    # One-hot fold/unfold matrices: column (w*C + co) <-> channel co.
    # Built from 2-D iotas so no in-kernel reshapes/relayouts are needed.
    r = jax.lax.broadcasted_iota(jnp.int32, (WC, c), 0)
    col = jax.lax.broadcasted_iota(jnp.int32, (WC, c), 1)
    fold = jnp.where((r % c) == col, 1.0, 0.0)               # (WC, C)  f32
    r2 = jax.lax.broadcasted_iota(jnp.int32, (c, WC), 0)
    col2 = jax.lax.broadcasted_iota(jnp.int32, (c, WC), 1)
    unfold = jnp.where(r2 == (col2 % c), 1.0, 0.0)           # (C, WC)  f32

    def shifted(act, kh):
        """Activation rows shifted by (kh-1) along H, zero at image borders."""
        if kh == 1:
            return act
        if kh == 0:   # output row i reads input row i-1
            s = pltpu.roll(act, shift=1, axis=0)
            return jnp.where(not_first, s, 0.0)
        # kh == 2: output row i reads input row i+1  (shift by -1 == NH-1)
        s = pltpu.roll(act, shift=NH - 1, axis=0)
        return jnp.where(not_last, s, 0.0)

    def conv_bn(act, b_ref, gb_ref):
        """3x3 conv (3 accumulated kh-band matmuls) + training-mode BN."""
        acc = jnp.dot(act.astype(jnp.bfloat16), b_ref[WC:2 * WC, :],
                      preferred_element_type=jnp.float32)            # kh = 1
        acc = acc + jnp.dot(shifted(act, 0).astype(jnp.bfloat16),
                            b_ref[0:WC, :],
                            preferred_element_type=jnp.float32)      # kh = 0
        acc = acc + jnp.dot(shifted(act, 2).astype(jnp.bfloat16),
                            b_ref[2 * WC:3 * WC, :],
                            preferred_element_type=jnp.float32)      # kh = 2

        # Single-pass batch-norm stats (training mode, biased variance).
        col_sum = jnp.sum(acc, axis=0, keepdims=True)                 # (1, WC)
        col_sq = jnp.sum(acc * acc, axis=0, keepdims=True)            # (1, WC)
        col_stats = jnp.concatenate([col_sum, col_sq], axis=0)        # (2, WC)
        ch_stats = jnp.dot(col_stats, fold,
                           preferred_element_type=jnp.float32)        # (2, C)
        mean = ch_stats[0:1, :] * inv_count
        mean_sq = ch_stats[1:2, :] * inv_count
        var = jnp.maximum(mean_sq - mean * mean, 0.0)
        scale = gb_ref[0:1, :] * jax.lax.rsqrt(var + eps)             # (1, C)
        shift = gb_ref[1:2, :] - mean * scale                         # (1, C)
        ss = jnp.concatenate([scale, shift], axis=0)                  # (2, C)
        ss_col = jnp.dot(ss, unfold,
                         preferred_element_type=jnp.float32)          # (2, WC)
        return acc * ss_col[0:1, :] + ss_col[1:2, :]                  # (NH, WC)

    x = x_ref[...]                                                    # (NH, WC) f32
    # ---- stage 1: relu(bn1(conv1(x))) ----
    y1 = jnp.maximum(conv_bn(x, b1_ref, gb1_ref), 0.0)
    # ---- stage 2: relu(bn2(conv2(y1)) + x) ----
    y2 = conv_bn(y1, b2_ref, gb2_ref) + x
    o_ref[...] = jnp.maximum(y2, 0.0).astype(o_ref.dtype)


def pack_params(params, width):
    """One-time host-side repack: banded bf16 conv weights + stacked (2,C) BN."""
    w1, g1, b1, w2, g2, b2 = params
    C = w1.shape[-1]
    B1 = _banded_weight(w1, width).astype(jnp.bfloat16)
    B2 = _banded_weight(w2, width).astype(jnp.bfloat16)
    gb1 = jnp.stack([g1, b1]).reshape(2, C).astype(jnp.float32)
    gb2 = jnp.stack([g2, b2]).reshape(2, C).astype(jnp.float32)
    return B1, gb1, B2, gb2


def basic_block_forward_lane_dense(x_2d, packed, *, n, h, w, c, eps=1e-5):
    """Lane-dense entry point: x_2d is (N*H, W*C) f32 (NHWC, channels in lanes).

    Use this across a network to avoid per-layer NCHW<->NHWC HBM transposes.
    """
    B1, gb1, B2, gb2 = packed
    assert x_2d.shape == (n * h, w * c)
    assert (w * c) % 128 == 0, "lane dim must be a multiple of 128 (unmasked vst)"
    assert (n * h) % 8 == 0, "row dim must be a multiple of 8 (sublane aligned)"

    kernel = functools.partial(_basic_block_kernel, n=n, h=h, w=w, c=c, eps=eps)
    return pl.pallas_call(
        kernel,
        out_shape=jax.ShapeDtypeStruct((n * h, w * c), jnp.float32),
        in_specs=[pl.BlockSpec(memory_space=pltpu.MemorySpace.VMEM)] * 5,
        out_specs=pl.BlockSpec(memory_space=pltpu.MemorySpace.VMEM),
    )(x_2d, B1, gb1, B2, gb2)


def basic_block_forward(x_nchw, params, *, eps=1e-5):
    """BasicBlock.forward with PyTorch NCHW layout (demo / interop wrapper only)."""
    w1, g1, b1, w2, g2, b2 = params
    N, C, H, W = x_nchw.shape
    KH, KW, Cin, Cout = w1.shape
    assert KH == 3 and KW == 3 and Cin == C and Cout == C, \
        "kernel specialized to 3x3, stride=1, in_planes == planes"

    # NCHW -> lane-dense (N*H, W*C).  The only transpose round trip; fuse into
    # the producer/consumer when chaining blocks by using the lane-dense entry.
    x2d = jnp.transpose(x_nchw, (0, 2, 3, 1)).reshape(N * H, W * C)
    packed = pack_params(params, W)
    out2d = basic_block_forward_lane_dense(x2d, packed, n=N, h=H, w=W, c=C, eps=eps)
    return jnp.transpose(out2d.reshape(N, H, W, C), (0, 3, 1, 2))


# ------------------------- pure-JAX reference ------------------------------
def _ref_bn(y, gamma, beta, eps=1e-5):
    mean = y.mean(axis=(0, 1, 2), keepdims=True)
    var = ((y - mean) ** 2).mean(axis=(0, 1, 2), keepdims=True)
    return (y - mean) * jax.lax.rsqrt(var + eps) * gamma + beta


def _ref_forward(x_nchw, params, eps=1e-5):
    w1, g1, b1, w2, g2, b2 = params
    x = jnp.transpose(x_nchw, (0, 2, 3, 1))
    conv = lambda a, w: jax.lax.conv_general_dilated(
        a, w, window_strides=(1, 1), padding='SAME',
        dimension_numbers=('NHWC', 'HWIO', 'NHWC'),
        precision=jax.lax.Precision.HIGHEST)
    out = jax.nn.relu(_ref_bn(conv(x, w1), g1, b1, eps))
    out = _ref_bn(conv(out, w2), g2, b2, eps) + x
    return jnp.transpose(jax.nn.relu(out), (0, 3, 1, 2))


if __name__ == "__main__":
    # Module-consistent small shapes: in_planes = planes = 8, kernel_size = 3,
    # stride = 1 -> identity shortcut.  W*C = 128 -> fully lane-dense;
    # N*H = 32 -> sublane aligned.
    N, C, H, W = 2, 8, 16, 16
    K = 3

    key = jax.random.PRNGKey(0)
    kx, kw1, kw2, kg1, kb1, kg2, kb2 = jax.random.split(key, 7)

    x = jax.random.normal(kx, (N, C, H, W), dtype=jnp.float32)

    # Deterministic parameter init (HWIO layout for the conv kernels).
    w1 = jax.random.normal(kw1, (K, K, C, C), dtype=jnp.float32) * 0.2
    w2 = jax.random.normal(kw2, (K, K, C, C), dtype=jnp.float32) * 0.2
    g1 = 1.0 + 0.1 * jax.random.normal(kg1, (C,), dtype=jnp.float32)
    b1 = 0.1 * jax.random.normal(kb1, (C,), dtype=jnp.float32)
    g2 = 1.0 + 0.1 * jax.random.normal(kg2, (C,), dtype=jnp.float32)
    b2 = 0.1 * jax.random.normal(kb2, (C,), dtype=jnp.float32)
    params = (w1, g1, b1, w2, g2, b2)

    out = jax.block_until_ready(basic_block_forward(x, params))
    ref = jax.block_until_ready(_ref_forward(x, params))

    assert out.shape == (N, C, H, W), out.shape
    max_err = float(jnp.max(jnp.abs(out - ref)))
    # bf16 MXU operands (f32 accumulation); the batch-norm re-normalization
    # absorbs most of the rounding, but the tolerance is looser than f32-only.
    assert max_err < 1e-1, f"mismatch vs reference: {max_err}"

    print("KERNEL_OK")
</pallas_src>

<mosaic_0001>
module attributes {stable_mosaic.version = 11 : i64} {
  func.func @_basic_block_kernel(%arg0: memref<32x128xf32, #tpu.memory_space<vmem>>, %arg1: memref<384x128xbf16, #tpu.memory_space<vmem>>, %arg2: memref<2x8xf32, #tpu.memory_space<vmem>>, %arg3: memref<384x128xbf16, #tpu.memory_space<vmem>>, %arg4: memref<2x8xf32, #tpu.memory_space<vmem>>, %arg5: memref<32x128xf32, #tpu.memory_space<vmem>>) attributes {dimension_semantics = [], scalar_prefetch = 0 : i64, scratch_operands = 0 : i64, tpu.core_type = #tpu.core_type<tc>} {
    %0 = tpu.iota {dimensions = array<i32: 0>} : vector<32x1xi32>
    %c16_i32 = arith.constant 16 : i32
    %c0_i32 = arith.constant 0 : i32
    %1 = arith.cmpi eq, %c16_i32, %c0_i32 : i32
    %c1_i32 = arith.constant 1 : i32
    %2 = arith.select %1, %c1_i32, %c16_i32 : i32
    %3 = vector.broadcast %2 : i32 to vector<32x1xi32>
    %4 = arith.remsi %0, %3 : vector<32x1xi32>
    %c0_i32_0 = arith.constant 0 : i32
    %5 = vector.broadcast %c0_i32_0 : i32 to vector<32x1xi32>
    %6 = arith.cmpi ne, %4, %5 : vector<32x1xi32>
    %c0_i32_1 = arith.constant 0 : i32
    %7 = vector.broadcast %c0_i32_1 : i32 to vector<32x1xi32>
    %8 = arith.cmpi slt, %4, %7 : vector<32x1xi32>
    %c0_i32_2 = arith.constant 0 : i32
    %9 = arith.cmpi slt, %2, %c0_i32_2 : i32
    %10 = vector.broadcast %9 : i1 to vector<32x1xi1>
    %11 = vector.broadcast %10 : vector<32x1xi1> to vector<32x1xi1>
    %12 = arith.xori %8, %11 : vector<32x1xi1>
    %13 = arith.andi %12, %6 : vector<32x1xi1>
    %14 = vector.broadcast %2 : i32 to vector<32x1xi32>
    %15 = arith.addi %4, %14 : vector<32x1xi32>
    %16 = arith.select %13, %15, %4 : vector<32x1xi1>, vector<32x1xi32>
    %c0_i32_3 = arith.constant 0 : i32
    %17 = vector.broadcast %c0_i32_3 : i32 to vector<32x1xi32>
    %18 = arith.cmpi ne, %16, %17 : vector<32x1xi32>
    %c15_i32 = arith.constant 15 : i32
    %19 = vector.broadcast %c15_i32 : i32 to vector<32x1xi32>
    %20 = arith.cmpi ne, %16, %19 : vector<32x1xi32>
    %21 = tpu.iota {dimensions = array<i32: 0>} : vector<128x8xi32>
    %22 = tpu.iota {dimensions = array<i32: 1>} : vector<128x8xi32>
    %c8_i32 = arith.constant 8 : i32
    %c0_i32_4 = arith.constant 0 : i32
    %23 = arith.cmpi eq, %c8_i32, %c0_i32_4 : i32
    %c1_i32_5 = arith.constant 1 : i32
    %24 = arith.select %23, %c1_i32_5, %c8_i32 : i32
    %25 = vector.broadcast %24 : i32 to vector<128x8xi32>
    %26 = arith.remsi %21, %25 : vector<128x8xi32>
    %c0_i32_6 = arith.constant 0 : i32
    %27 = vector.broadcast %c0_i32_6 : i32 to vector<128x8xi32>
    %28 = arith.cmpi ne, %26, %27 : vector<128x8xi32>
    %c0_i32_7 = arith.constant 0 : i32
    %29 = vector.broadcast %c0_i32_7 : i32 to vector<128x8xi32>
    %30 = arith.cmpi slt, %26, %29 : vector<128x8xi32>
    %c0_i32_8 = arith.constant 0 : i32
    %31 = arith.cmpi slt, %24, %c0_i32_8 : i32
    %32 = vector.broadcast %31 : i1 to vector<128x8xi1>
    %33 = vector.broadcast %32 : vector<128x8xi1> to vector<128x8xi1>
    %34 = arith.xori %30, %33 : vector<128x8xi1>
    %35 = arith.andi %34, %28 : vector<128x8xi1>
    %36 = vector.broadcast %24 : i32 to vector<128x8xi32>
    %37 = arith.addi %26, %36 : vector<128x8xi32>
    %38 = arith.select %35, %37, %26 : vector<128x8xi1>, vector<128x8xi32>
    %39 = arith.cmpi eq, %38, %22 : vector<128x8xi32>
    %cst = arith.constant 1.000000e+00 : f32
    %cst_9 = arith.constant 0.000000e+00 : f32
    %40 = vector.broadcast %cst : f32 to vector<128x8xf32>
    %41 = vector.broadcast %cst_9 : f32 to vector<128x8xf32>
    %42 = arith.select %39, %40, %41 : vector<128x8xi1>, vector<128x8xf32>
    %43 = tpu.iota {dimensions = array<i32: 0>} : vector<8x128xi32>
    %44 = tpu.iota {dimensions = array<i32: 1>} : vector<8x128xi32>
    %c8_i32_10 = arith.constant 8 : i32
    %c0_i32_11 = arith.constant 0 : i32
    %45 = arith.cmpi eq, %c8_i32_10, %c0_i32_11 : i32
    %c1_i32_12 = arith.constant 1 : i32
    %46 = arith.select %45, %c1_i32_12, %c8_i32_10 : i32
    %47 = vector.broadcast %46 : i32 to vector<8x128xi32>
    %48 = arith.remsi %44, %47 : vector<8x128xi32>
    %c0_i32_13 = arith.constant 0 : i32
    %49 = vector.broadcast %c0_i32_13 : i32 to vector<8x128xi32>
    %50 = arith.cmpi ne, %48, %49 : vector<8x128xi32>
    %c0_i32_14 = arith.constant 0 : i32
    %51 = vector.broadcast %c0_i32_14 : i32 to vector<8x128xi32>
    %52 = arith.cmpi slt, %48, %51 : vector<8x128xi32>
    %c0_i32_15 = arith.constant 0 : i32
    %53 = arith.cmpi slt, %46, %c0_i32_15 : i32
    %54 = vector.broadcast %53 : i1 to vector<8x128xi1>
    %55 = vector.broadcast %54 : vector<8x128xi1> to vector<8x128xi1>
    %56 = arith.xori %52, %55 : vector<8x128xi1>
    %57 = arith.andi %56, %50 : vector<8x128xi1>
    %58 = vector.broadcast %46 : i32 to vector<8x128xi32>
    %59 = arith.addi %48, %58 : vector<8x128xi32>
    %60 = arith.select %57, %59, %48 : vector<8x128xi1>, vector<8x128xi32>
    %61 = arith.cmpi eq, %43, %60 : vector<8x128xi32>
    %cst_16 = arith.constant 1.000000e+00 : f32
    %cst_17 = arith.constant 0.000000e+00 : f32
    %62 = vector.broadcast %cst_16 : f32 to vector<8x128xf32>
    %63 = vector.broadcast %cst_17 : f32 to vector<8x128xf32>
    %64 = arith.select %61, %62, %63 : vector<8x128xi1>, vector<8x128xf32>
    %c0 = arith.constant 0 : index
    %c0_18 = arith.constant 0 : index
    %65 = vector.load %arg0[%c0, %c0_18] : memref<32x128xf32, #tpu.memory_space<vmem>>, vector<32x128xf32>
    %66 = arith.truncf %65 : vector<32x128xf32> to vector<32x128xbf16>
    %c128 = arith.constant 128 : index
    %c0_19 = arith.constant 0 : index
    %67 = vector.load %arg1[%c128, %c0_19] : memref<384x128xbf16, #tpu.memory_space<vmem>>, vector<128x128xbf16>
    %cst_20 = arith.constant dense<0.000000e+00> : vector<32x128xf32>
    %68 = tpu.matmul %66, %67, %cst_20 {dimension_numbers = #tpu.dot_dimension_numbers<[1], [0], [0], [1], [0, 0, 1, 1], [], []>} : vector<32x128xbf16>, vector<128x128xbf16>, vector<32x128xf32> -> vector<32x128xf32>
    %c1_i32_21 = arith.constant 1 : i32
    %69 = tpu.dynamic_rotate %65 by %c1_i32_21 dim 0 : vector<32x128xf32>, i32 -> vector<32x128xf32>
    %cst_22 = arith.constant 0.000000e+00 : f32
    %70 = vector.shape_cast %18 : vector<32x1xi1> to vector<32x1xi1>
    %71 = vector.broadcast %70 : vector<32x1xi1> to vector<32x128xi1>
    %72 = vector.broadcast %cst_22 : f32 to vector<32x128xf32>
    %73 = arith.select %71, %69, %72 : vector<32x128xi1>, vector<32x128xf32>
    %74 = arith.truncf %73 : vector<32x128xf32> to vector<32x128xbf16>
    %c0_23 = arith.constant 0 : index
    %c0_24 = arith.constant 0 : index
    %75 = vector.load %arg1[%c0_23, %c0_24] : memref<384x128xbf16, #tpu.memory_space<vmem>>, vector<128x128xbf16>
    %cst_25 = arith.constant dense<0.000000e+00> : vector<32x128xf32>
    %76 = tpu.matmul %74, %75, %cst_25 {dimension_numbers = #tpu.dot_dimension_numbers<[1], [0], [0], [1], [0, 0, 1, 1], [], []>} : vector<32x128xbf16>, vector<128x128xbf16>, vector<32x128xf32> -> vector<32x128xf32>
    %77 = arith.addf %68, %76 : vector<32x128xf32>
    %c31_i32 = arith.constant 31 : i32
    %78 = tpu.dynamic_rotate %65 by %c31_i32 dim 0 : vector<32x128xf32>, i32 -> vector<32x128xf32>
    %cst_26 = arith.constant 0.000000e+00 : f32
    %79 = vector.shape_cast %20 : vector<32x1xi1> to vector<32x1xi1>
    %80 = vector.broadcast %79 : vector<32x1xi1> to vector<32x128xi1>
    %81 = vector.broadcast %cst_26 : f32 to vector<32x128xf32>
    %82 = arith.select %80, %78, %81 : vector<32x128xi1>, vector<32x128xf32>
    %83 = arith.truncf %82 : vector<32x128xf32> to vector<32x128xbf16>
    %c256 = arith.constant 256 : index
    %c0_27 = arith.constant 0 : index
    %84 = vector.load %arg1[%c256, %c0_27] : memref<384x128xbf16, #tpu.memory_space<vmem>>, vector<128x128xbf16>
    %cst_28 = arith.constant dense<0.000000e+00> : vector<32x128xf32>
    %85 = tpu.matmul %83, %84, %cst_28 {dimension_numbers = #tpu.dot_dimension_numbers<[1], [0], [0], [1], [0, 0, 1, 1], [], []>} : vector<32x128xbf16>, vector<128x128xbf16>, vector<32x128xf32> -> vector<32x128xf32>
    %86 = arith.addf %77, %85 : vector<32x128xf32>
    %cst_29 = arith.constant dense<0.000000e+00> : vector<128xf32>
    %87 = vector.multi_reduction <add>, %86, %cst_29 [0] : vector<32x128xf32> to vector<128xf32>
    %88 = vector.shape_cast %87 : vector<128xf32> to vector<1x128xf32>
    %89 = arith.mulf %86, %86 : vector<32x128xf32>
    %cst_30 = arith.constant dense<0.000000e+00> : vector<128xf32>
    %90 = vector.multi_reduction <add>, %89, %cst_30 [0] : vector<32x128xf32> to vector<128xf32>
    %91 = vector.shape_cast %90 : vector<128xf32> to vector<1x128xf32>
    %92 = tpu.concatenate %88, %91 in 0 : vector<1x128xf32>, vector<1x128xf32> -> vector<2x128xf32>
    %cst_31 = arith.constant dense<0.000000e+00> : vector<2x8xf32>
    %93 = tpu.matmul %92, %42, %cst_31 {dimension_numbers = #tpu.dot_dimension_numbers<[1], [0], [0], [1], [0, 0, 1, 1], [], []>} : vector<2x128xf32>, vector<128x8xf32>, vector<2x8xf32> -> vector<2x8xf32>
    %94 = vector.extract_strided_slice %93 {offsets = [0, 0], sizes = [1, 8], strides = [1, 1]} : vector<2x8xf32> to vector<1x8xf32>
    %cst_32 = arith.constant 0.001953125 : f32
    %95 = vector.broadcast %cst_32 : f32 to vector<1x8xf32>
    %96 = arith.mulf %94, %95 : vector<1x8xf32>
    %97 = vector.extract_strided_slice %93 {offsets = [1, 0], sizes = [1, 8], strides = [1, 1]} : vector<2x8xf32> to vector<1x8xf32>
    %cst_33 = arith.constant 0.001953125 : f32
    %98 = vector.broadcast %cst_33 : f32 to vector<1x8xf32>
    %99 = arith.mulf %97, %98 : vector<1x8xf32>
    %100 = arith.mulf %96, %96 : vector<1x8xf32>
    %101 = arith.subf %99, %100 : vector<1x8xf32>
    %cst_34 = arith.constant 0.000000e+00 : f32
    %102 = vector.broadcast %cst_34 : f32 to vector<1x8xf32>
    %103 = arith.maximumf %101, %102 : vector<1x8xf32>
    %c0_35 = arith.constant 0 : index
    %c0_36 = arith.constant 0 : index
    %104 = vector.load %arg2[%c0_35, %c0_36] : memref<2x8xf32, #tpu.memory_space<vmem>>, vector<1x8xf32>
    %cst_37 = arith.constant 9.99999974E-6 : f32
    %105 = vector.broadcast %cst_37 : f32 to vector<1x8xf32>
    %106 = arith.addf %103, %105 : vector<1x8xf32>
    %107 = math.rsqrt %106 : vector<1x8xf32>
    %108 = arith.mulf %104, %107 : vector<1x8xf32>
    %c1 = arith.constant 1 : index
    %c0_38 = arith.constant 0 : index
    %109 = vector.load %arg2[%c1, %c0_38] : memref<2x8xf32, #tpu.memory_space<vmem>>, vector<1x8xf32>
    %110 = arith.mulf %96, %108 : vector<1x8xf32>
    %111 = arith.subf %109, %110 : vector<1x8xf32>
    %112 = tpu.concatenate %108, %111 in 0 : vector<1x8xf32>, vector<1x8xf32> -> vector<2x8xf32>
    %cst_39 = arith.constant dense<0.000000e+00> : vector<2x128xf32>
    %113 = tpu.matmul %112, %64, %cst_39 {dimension_numbers = #tpu.dot_dimension_numbers<[1], [0], [0], [1], [0, 0, 1, 1], [], []>} : vector<2x8xf32>, vector<8x128xf32>, vector<2x128xf32> -> vector<2x128xf32>
    %114 = vector.extract_strided_slice %113 {offsets = [0, 0], sizes = [1, 128], strides = [1, 1]} : vector<2x128xf32> to vector<1x128xf32>
    %115 = vector.broadcast %114 : vector<1x128xf32> to vector<32x128xf32>
    %116 = arith.mulf %86, %115 : vector<32x128xf32>
    %117 = vector.extract_strided_slice %113 {offsets = [1, 0], sizes = [1, 128], strides = [1, 1]} : vector<2x128xf32> to vector<1x128xf32>
    %118 = vector.broadcast %117 : vector<1x128xf32> to vector<32x128xf32>
    %119 = arith.addf %116, %118 : vector<32x128xf32>
    %cst_40 = arith.constant 0.000000e+00 : f32
    %120 = vector.broadcast %cst_40 : f32 to vector<32x128xf32>
    %121 = arith.maximumf %119, %120 : vector<32x128xf32>
    %122 = arith.truncf %121 : vector<32x128xf32> to vector<32x128xbf16>
    %c128_41 = arith.constant 128 : index
    %c0_42 = arith.constant 0 : index
    %123 = vector.load %arg3[%c128_41, %c0_42] : memref<384x128xbf16, #tpu.memory_space<vmem>>, vector<128x128xbf16>
    %cst_43 = arith.constant dense<0.000000e+00> : vector<32x128xf32>
    %124 = tpu.matmul %122, %123, %cst_43 {dimension_numbers = #tpu.dot_dimension_numbers<[1], [0], [0], [1], [0, 0, 1, 1], [], []>} : vector<32x128xbf16>, vector<128x128xbf16>, vector<32x128xf32> -> vector<32x128xf32>
    %c1_i32_44 = arith.constant 1 : i32
    %125 = tpu.dynamic_rotate %121 by %c1_i32_44 dim 0 : vector<32x128xf32>, i32 -> vector<32x128xf32>
    %cst_45 = arith.constant 0.000000e+00 : f32
    %126 = vector.shape_cast %18 : vector<32x1xi1> to vector<32x1xi1>
    %127 = vector.broadcast %126 : vector<32x1xi1> to vector<32x128xi1>
    %128 = vector.broadcast %cst_45 : f32 to vector<32x128xf32>
    %129 = arith.select %127, %125, %128 : vector<32x128xi1>, vector<32x128xf32>
    %130 = arith.truncf %129 : vector<32x128xf32> to vector<32x128xbf16>
    %c0_46 = arith.constant 0 : index
    %c0_47 = arith.constant 0 : index
    %131 = vector.load %arg3[%c0_46, %c0_47] : memref<384x128xbf16, #tpu.memory_space<vmem>>, vector<128x128xbf16>
    %cst_48 = arith.constant dense<0.000000e+00> : vector<32x128xf32>
    %132 = tpu.matmul %130, %131, %cst_48 {dimension_numbers = #tpu.dot_dimension_numbers<[1], [0], [0], [1], [0, 0, 1, 1], [], []>} : vector<32x128xbf16>, vector<128x128xbf16>, vector<32x128xf32> -> vector<32x128xf32>
    %133 = arith.addf %124, %132 : vector<32x128xf32>
    %c31_i32_49 = arith.constant 31 : i32
    %134 = tpu.dynamic_rotate %121 by %c31_i32_49 dim 0 : vector<32x128xf32>, i32 -> vector<32x128xf32>
    %cst_50 = arith.constant 0.000000e+00 : f32
    %135 = vector.shape_cast %20 : vector<32x1xi1> to vector<32x1xi1>
    %136 = vector.broadcast %135 : vector<32x1xi1> to vector<32x128xi1>
    %137 = vector.broadcast %cst_50 : f32 to vector<32x128xf32>
    %138 = arith.select %136, %134, %137 : vector<32x128xi1>, vector<32x128xf32>
    %139 = arith.truncf %138 : vector<32x128xf32> to vector<32x128xbf16>
    %c256_51 = arith.constant 256 : index
    %c0_52 = arith.constant 0 : index
    %140 = vector.load %arg3[%c256_51, %c0_52] : memref<384x128xbf16, #tpu.memory_space<vmem>>, vector<128x128xbf16>
    %cst_53 = arith.constant dense<0.000000e+00> : vector<32x128xf32>
    %141 = tpu.matmul %139, %140, %cst_53 {dimension_numbers = #tpu.dot_dimension_numbers<[1], [0], [0], [1], [0, 0, 1, 1], [], []>} : vector<32x128xbf16>, vector<128x128xbf16>, vector<32x128xf32> -> vector<32x128xf32>
    %142 = arith.addf %133, %141 : vector<32x128xf32>
    %cst_54 = arith.constant dense<0.000000e+00> : vector<128xf32>
    %143 = vector.multi_reduction <add>, %142, %cst_54 [0] : vector<32x128xf32> to vector<128xf32>
    %144 = vector.shape_cast %143 : vector<128xf32> to vector<1x128xf32>
    %145 = arith.mulf %142, %142 : vector<32x128xf32>
    %cst_55 = arith.constant dense<0.000000e+00> : vector<128xf32>
    %146 = vector.multi_reduction <add>, %145, %cst_55 [0] : vector<32x128xf32> to vector<128xf32>
    %147 = vector.shape_cast %146 : vector<128xf32> to vector<1x128xf32>
    %148 = tpu.concatenate %144, %147 in 0 : vector<1x128xf32>, vector<1x128xf32> -> vector<2x128xf32>
    %cst_56 = arith.constant dense<0.000000e+00> : vector<2x8xf32>
    %149 = tpu.matmul %148, %42, %cst_56 {dimension_numbers = #tpu.dot_dimension_numbers<[1], [0], [0], [1], [0, 0, 1, 1], [], []>} : vector<2x128xf32>, vector<128x8xf32>, vector<2x8xf32> -> vector<2x8xf32>
    %150 = vector.extract_strided_slice %149 {offsets = [0, 0], sizes = [1, 8], strides = [1, 1]} : vector<2x8xf32> to vector<1x8xf32>
    %cst_57 = arith.constant 0.001953125 : f32
    %151 = vector.broadcast %cst_57 : f32 to vector<1x8xf32>
    %152 = arith.mulf %150, %151 : vector<1x8xf32>
    %153 = vector.extract_strided_slice %149 {offsets = [1, 0], sizes = [1, 8], strides = [1, 1]} : vector<2x8xf32> to vector<1x8xf32>
    %cst_58 = arith.constant 0.001953125 : f32
    %154 = vector.broadcast %cst_58 : f32 to vector<1x8xf32>
    %155 = arith.mulf %153, %154 : vector<1x8xf32>
    %156 = arith.mulf %152, %152 : vector<1x8xf32>
    %157 = arith.subf %155, %156 : vector<1x8xf32>
    %cst_59 = arith.constant 0.000000e+00 : f32
    %158 = vector.broadcast %cst_59 : f32 to vector<1x8xf32>
    %159 = arith.maximumf %157, %158 : vector<1x8xf32>
    %c0_60 = arith.constant 0 : index
    %c0_61 = arith.constant 0 : index
    %160 = vector.load %arg4[%c0_60, %c0_61] : memref<2x8xf32, #tpu.memory_space<vmem>>, vector<1x8xf32>
    %cst_62 = arith.constant 9.99999974E-6 : f32
    %161 = vector.broadcast %cst_62 : f32 to vector<1x8xf32>
    %162 = arith.addf %159, %161 : vector<1x8xf32>
    %163 = math.rsqrt %162 : vector<1x8xf32>
    %164 = arith.mulf %160, %163 : vector<1x8xf32>
    %c1_63 = arith.constant 1 : index
    %c0_64 = arith.constant 0 : index
    %165 = vector.load %arg4[%c1_63, %c0_64] : memref<2x8xf32, #tpu.memory_space<vmem>>, vector<1x8xf32>
    %166 = arith.mulf %152, %164 : vector<1x8xf32>
    %167 = arith.subf %165, %166 : vector<1x8xf32>
    %168 = tpu.concatenate %164, %167 in 0 : vector<1x8xf32>, vector<1x8xf32> -> vector<2x8xf32>
    %cst_65 = arith.constant dense<0.000000e+00> : vector<2x128xf32>
    %169 = tpu.matmul %168, %64, %cst_65 {dimension_numbers = #tpu.dot_dimension_numbers<[1], [0], [0], [1], [0, 0, 1, 1], [], []>} : vector<2x8xf32>, vector<8x128xf32>, vector<2x128xf32> -> vector<2x128xf32>
    %170 = vector.extract_strided_slice %169 {offsets = [0, 0], sizes = [1, 128], strides = [1, 1]} : vector<2x128xf32> to vector<1x128xf32>
    %171 = vector.broadcast %170 : vector<1x128xf32> to vector<32x128xf32>
    %172 = arith.mulf %142, %171 : vector<32x128xf32>
    %173 = vector.extract_strided_slice %169 {offsets = [1, 0], sizes = [1, 128], strides = [1, 1]} : vector<2x128xf32> to vector<1x128xf32>
    %174 = vector.broadcast %173 : vector<1x128xf32> to vector<32x128xf32>
    %175 = arith.addf %172, %174 : vector<32x128xf32>
    %176 = arith.addf %175, %65 : vector<32x128xf32>
    %cst_66 = arith.constant 0.000000e+00 : f32
    %177 = vector.broadcast %cst_66 : f32 to vector<32x128xf32>
    %178 = arith.maximumf %176, %177 : vector<32x128xf32>
    %c0_67 = arith.constant 0 : index
    %c0_68 = arith.constant 0 : index
    %179 = vector.load %arg5[%c0_67, %c0_68] : memref<32x128xf32, #tpu.memory_space<vmem>>, vector<32x128xf32>
    tpu.vector_store %arg5[%c0_67, %c0_68], %178 {strides = array<i32>} : memref<32x128xf32, #tpu.memory_space<vmem>>, vector<32x128xf32>,
    return
  }
}

</mosaic_0001>

<llo_original>
// kernel: tpu_custom_call.1
$region0: #{tpu_custom_call.1}
  #allocation0 [shape = 'u32[]', space=smem, size = 0x4, offset = 0x4, fixed_abs, tag = 'smem constant byte address 0x4 - core index']
  #allocation1 [shape = 'u32[72,128]{1,0:T(1,128)}', space=vmem, size = 0x9000, scoped, tag = 'internal scratch']
  %s0 = inlined_call_operand.hbm [shape: f32[32,128], index: 0, kind: input, shape index: {}]
  %s1 = inlined_call_operand.hbm [shape: bf16[384,128], index: 1, kind: input, shape index: {}]
  %s2 = inlined_call_operand.hbm [shape: f32[2,8], index: 2, kind: input, shape index: {}]
  %s3 = inlined_call_operand.hbm [shape: bf16[384,128], index: 3, kind: input, shape index: {}]
  %s4 = inlined_call_operand.vmem [shape: f32[2,8], index: 4, kind: input, shape index: {}]
  %s5 = inlined_call_operand.hbm [shape: f32[32,128], index: 5, kind: output, shape index: {}]
  %s6 = sld [smem:[#allocation0]]
  $region46: #{tpu_custom_call.1} parent=0
    _
  %s8 = ssub.s32 1, %s6
  %s9 = scalar_select 0, %s8, %s6
  $region1: #{tpu_custom_call.1} parent=0
    #allocation2 [shape = 'u8[16384]{0}', space=vmem, size = 0x4000, scoped, tag = 'input window, operand 0, single buffered']
    #allocation3 [shape = 's32[1]{0}', space=sflag, size = 0x4, scoped, tag = 'scoped memory for tpu_custom_call.1']
    #allocation4 [shape = 's32[1]{0}', space=sflag, size = 0x4, scoped, tag = 'scoped memory for tpu_custom_call.1']
    #allocation5 [shape = 'u8[98304]{0}', space=vmem, size = 0x18000, scoped, tag = 'input window, operand 1, single buffered']
    #allocation6 [shape = 's32[1]{0}', space=sflag, size = 0x4, scoped, tag = 'scoped memory for tpu_custom_call.1']
    #allocation7 [shape = 'u8[1024]{0}', space=vmem, size = 0x400, scoped, tag = 'input window, operand 2, single buffered']
    #allocation8 [shape = 'u8[98304]{0}', space=vmem, size = 0x18000, scoped, tag = 'input window, operand 3, single buffered']
    #allocation9 [shape = 's32[1]{0}', space=sflag, size = 0x4, scoped, tag = 'scoped memory for tpu_custom_call.1']
    #allocation10 [shape = 'u8[16384]{0}', space=vmem, size = 0x4000, scoped, tag = 'output window, operand 0, single buffered']
    %10 = vsyncpa [#allocation3], 0
    %11 = vsyncpa [#allocation6], 0
    %12 = vsyncpa [#allocation9], 0
    %13 = vsyncpa [#allocation4], 0
    // Predicated region
    $region2: #{tpu_custom_call.1} parent=1 // pred_check
      _
    $region3: #{tpu_custom_call.1} parent=1 // pred_check_branch
      %15 = sbr.rel (0) target = $region5
    $region4: #{tpu_custom_call.1} parent=1 // pred_region
      %17 = vsyncadd [#allocation3], 0
      %s18 = sshll.u32 %s0, 4
      %s19 = int_to_ptr.hbm [resolvable:$true] %s18
      %s20 = sshll.u32 [#allocation2], 4
      %s21 = int_to_ptr.vmem [resolvable:$true] %s20
      %26 = dma.hbm_to_vmem [thread:$0]  %s19, 512, %s21, [#allocation3], 128, 128, 8
    $region5: #{tpu_custom_call.1} parent=1 // pred_fallthru
      _
    // Predicated region
    $region6: #{tpu_custom_call.1} parent=1 // pred_check
      _
    $region7: #{tpu_custom_call.1} parent=1 // pred_check_branch
      %28 = sbr.rel (0) target = $region9
    $region8: #{tpu_custom_call.1} parent=1 // pred_region
      %30 = vsyncadd [#allocation6], 0
      %s31 = sshll.u32 %s1, 4
      %s32 = int_to_ptr.hbm [resolvable:$true] %s31
      %s33 = sshll.u32 [#allocation5], 4
      %s34 = int_to_ptr.vmem [resolvable:$true] %s33
      %39 = dma.hbm_to_vmem [thread:$0]  %s32, 3072, %s34, [#allocation6], 64, 64, 4
    $region9: #{tpu_custom_call.1} parent=1 // pred_fallthru
      _
    // Predicated region
    $region10: #{tpu_custom_call.1} parent=1 // pred_check
      _
    $region11: #{tpu_custom_call.1} parent=1 // pred_check_branch
      %41 = sbr.rel (0) target = $region13
    $region12: #{tpu_custom_call.1} parent=1 // pred_region
      %43 = vsyncadd [#allocation6], 0
      %s45 = sshll.u32 %s2, 4
      %s46 = int_to_ptr.hbm [resolvable:$true] %s45
      %s47 = sshll.u32 [#allocation7], 4
      %s48 = int_to_ptr.vmem [resolvable:$true] %s47
      %50 = dma.hbm_to_vmem [thread:$0]  %s46, 32, %s48, [#allocation6]
    $region13: #{tpu_custom_call.1} parent=1 // pred_fallthru
      _
    // Predicated region
    $region14: #{tpu_custom_call.1} parent=1 // pred_check
      _
    $region15: #{tpu_custom_call.1} parent=1 // pred_check_branch
      %52 = sbr.rel (0) target = $region17
    $region16: #{tpu_custom_call.1} parent=1 // pred_region
      %54 = vsyncadd [#allocation9], 0
      %s55 = sshll.u32 %s3, 4
      %s56 = int_to_ptr.hbm [resolvable:$true] %s55
      %s57 = sshll.u32 [#allocation8], 4
      %s58 = int_to_ptr.vmem [resolvable:$true] %s57
      %63 = dma.hbm_to_vmem [thread:$0]  %s56, 3072, %s58, [#allocation9], 64, 64, 4
    $region17: #{tpu_custom_call.1} parent=1 // pred_fallthru
      _
    // Predicated region
    $region18: #{tpu_custom_call.1} parent=1 // pred_check
      _
    $region19: #{tpu_custom_call.1} parent=1 // pred_check_branch
      %65 = sbr.rel (0) target = $region21
    $region20: #{tpu_custom_call.1} parent=1 // pred_region
      _
    $region21: #{tpu_custom_call.1} parent=1 // pred_fallthru
      _
    // Predicated region
    $region22: #{tpu_custom_call.1} parent=1 // pred_check
      _
    $region23: #{tpu_custom_call.1} parent=1 // pred_check_branch
      %67 = sbr.rel (0) target = $region25
    $region24: #{tpu_custom_call.1} parent=1 // pred_region
      %69 = dma.done [#allocation3], 512
    $region25: #{tpu_custom_call.1} parent=1 // pred_fallthru
      _
    // Predicated region
    $region26: #{tpu_custom_call.1} parent=1 // pred_check
      _
    $region27: #{tpu_custom_call.1} parent=1 // pred_check_branch
      %71 = sbr.rel (0) target = $region29
    $region28: #{tpu_custom_call.1} parent=1 // pred_region
      %73 = dma.done [#allocation6], 3072
    $region29: #{tpu_custom_call.1} parent=1 // pred_fallthru
      _
    // Predicated region
    $region30: #{tpu_custom_call.1} parent=1 // pred_check
      _
    $region31: #{tpu_custom_call.1} parent=1 // pred_check_branch
      %75 = sbr.rel (0) target = $region33
    $region32: #{tpu_custom_call.1} parent=1 // pred_region
      %77 = dma.done [#allocation6], 32
    $region33: #{tpu_custom_call.1} parent=1 // pred_fallthru
      _
    // Predicated region
    $region34: #{tpu_custom_call.1} parent=1 // pred_check
      _
    $region35: #{tpu_custom_call.1} parent=1 // pred_check_branch
      %79 = sbr.rel (0) target = $region37
    $region36: #{tpu_custom_call.1} parent=1 // pred_region
      %81 = dma.done [#allocation9], 3072
    $region37: #{tpu_custom_call.1} parent=1 // pred_fallthru
      _
    %v82 = vlaneseq
    %v83 = vshrl.u32 %v82, 7
    %v84 = vadd.s32 %v83, 8
    %v85 = vadd.s32 %v83, 16
    %v86 = vadd.s32 %v83, 24
    %vm87 = vcmp.lt.s32.totalorder %v83, 0
    %v88 = vsub.s32 0, %v83
    %v89 = vsel %vm87, %v88, %v83
    %v90 = vshrl.u32 %v89, 4
    %v91 = vand.u32 %v89, 15
    %v92 = vsub.s32 0, %v91
    %v93 = vsel %vm87, %v92, %v91
    %vm94 = vcmp.lt.s32.totalorder %v84, 0
    %v95 = vsub.s32 0, %v84
    %v96 = vsel %vm94, %v95, %v84
    %v97 = vshrl.u32 %v96, 4
    %v98 = vand.u32 %v96, 15
    %v99 = vsub.s32 0, %v98
    %v100 = vsel %vm94, %v99, %v98
    %vm101 = vcmp.lt.s32.totalorder %v85, 0
    %v102 = vsub.s32 0, %v85
    %v103 = vsel %vm101, %v102, %v85
    %v104 = vshrl.u32 %v103, 4
    %v105 = vand.u32 %v103, 15
    %v106 = vsub.s32 0, %v105
    %v107 = vsel %vm101, %v106, %v105
    %vm108 = vcmp.lt.s32.totalorder %v86, 0
    %v109 = vsub.s32 0, %v86
    %v110 = vsel %vm108, %v109, %v86
    %v111 = vshrl.u32 %v110, 4
    %v112 = vand.u32 %v110, 15
    %v113 = vsub.s32 0, %v112
    %v114 = vsel %vm108, %v113, %v112
    %vm115 = vcmp.ne.s32.totalorder %v93, 0
    %vm116 = vcmp.ne.s32.totalorder %v100, 0
    %vm117 = vcmp.ne.s32.totalorder %v107, 0
    %vm118 = vcmp.ne.s32.totalorder %v114, 0
    %vm119 = vcmp.lt.s32.totalorder %v93, 0
    %vm120 = vcmp.lt.s32.totalorder %v100, 0
    %vm121 = vcmp.lt.s32.totalorder %v107, 0
    %vm122 = vcmp.lt.s32.totalorder %v114, 0
    %vm123 = vmand %vm119, %vm115
    %vm124 = vmand %vm120, %vm116
    %vm125 = vmand %vm121, %vm117
    %vm126 = vmand %vm122, %vm118
    %v127 = vadd.s32 %v93, 16
    %v128 = vadd.s32 %v100, 16
    %v129 = vadd.s32 %v107, 16
    %v130 = vadd.s32 %v114, 16
    %v131 = vsel %vm123, %v127, %v93
    %v132 = vsel %vm124, %v128, %v100
    %v133 = vsel %vm125, %v129, %v107
    %v134 = vsel %vm126, %v130, %v114
    %vm135 = vcmp.ne.s32.totalorder %v131, 0
    %vm136 = vcmp.ne.s32.totalorder %v132, 0
    %vm137 = vcmp.ne.s32.totalorder %v133, 0
    %vm138 = vcmp.ne.s32.totalorder %v134, 0
    %vm139 = vcmp.ne.s32.totalorder %v131, 15
    %vm140 = vcmp.ne.s32.totalorder %v132, 15
    %vm141 = vcmp.ne.s32.totalorder %v133, 15
    %vm142 = vcmp.ne.s32.totalorder %v134, 15
    %v143 = vadd.s32 %v83, 32
    %v144 = vadd.s32 %v83, 40
    %v145 = vadd.s32 %v83, 48
    %v146 = vadd.s32 %v83, 56
    %v147 = vadd.s32 %v83, 64
    %v148 = vadd.s32 %v83, 72
    %v149 = vadd.s32 %v83, 80
    %v150 = vadd.s32 %v83, 88
    %v151 = vadd.s32 %v83, 96
    %v152 = vadd.s32 %v83, 104
    %v153 = vadd.s32 %v83, 112
    %v154 = vadd.s32 %v83, 120
    %v155 = vlaneseq
    %v156 = vand.u32 %v155, 127
    %vm157 = vcmp.lt.s32.totalorder %v83, 0
    %v158 = vsub.s32 0, %v83
    %v159 = vsel %vm157, %v158, %v83
    %v160 = vshrl.u32 %v159, 3
    %v161 = vand.u32 %v159, 7
    %v162 = vsub.s32 0, %v161
    %v163 = vsel %vm157, %v162, %v161
    %vm164 = vcmp.lt.s32.totalorder %v84, 0
    %v165 = vsub.s32 0, %v84
    %v166 = vsel %vm164, %v165, %v84
    %v167 = vshrl.u32 %v166, 3
    %v168 = vand.u32 %v166, 7
    %v169 = vsub.s32 0, %v168
    %v170 = vsel %vm164, %v169, %v168
    %vm171 = vcmp.lt.s32.totalorder %v85, 0
    %v172 = vsub.s32 0, %v85
    %v173 = vsel %vm171, %v172, %v85
    %v174 = vshrl.u32 %v173, 3
    %v175 = vand.u32 %v173, 7
    %v176 = vsub.s32 0, %v175
    %v177 = vsel %vm171, %v176, %v175
    %vm178 = vcmp.lt.s32.totalorder %v86, 0
    %v179 = vsub.s32 0, %v86
    %v180 = vsel %vm178, %v179, %v86
    %v181 = vshrl.u32 %v180, 3
    %v182 = vand.u32 %v180, 7
    %v183 = vsub.s32 0, %v182
    %v184 = vsel %vm178, %v183, %v182
    %vm185 = vcmp.lt.s32.totalorder %v143, 0
    %v186 = vsub.s32 0, %v143
    %v187 = vsel %vm185, %v186, %v143
    %v188 = vshrl.u32 %v187, 3
    %v189 = vand.u32 %v187, 7
    %v190 = vsub.s32 0, %v189
    %v191 = vsel %vm185, %v190, %v189
    %vm192 = vcmp.lt.s32.totalorder %v144, 0
    %v193 = vsub.s32 0, %v144
    %v194 = vsel %vm192, %v193, %v144
    %v195 = vshrl.u32 %v194, 3
    %v196 = vand.u32 %v194, 7
    %v197 = vsub.s32 0, %v196
    %v198 = vsel %vm192, %v197, %v196
    %vm199 = vcmp.lt.s32.totalorder %v145, 0
    %v200 = vsub.s32 0, %v145
    %v201 = vsel %vm199, %v200, %v145
    %v202 = vshrl.u32 %v201, 3
    %v203 = vand.u32 %v201, 7
    %v204 = vsub.s32 0, %v203
    %v205 = vsel %vm199, %v204, %v203
    %vm206 = vcmp.lt.s32.totalorder %v146, 0
    %v207 = vsub.s32 0, %v146
    %v208 = vsel %vm206, %v207, %v146
    %v209 = vshrl.u32 %v208, 3
    %v210 = vand.u32 %v208, 7
    %v211 = vsub.s32 0, %v210
    %v212 = vsel %vm206, %v211, %v210
    %vm213 = vcmp.lt.s32.totalorder %v147, 0
    %v214 = vsub.s32 0, %v147
    %v215 = vsel %vm213, %v214, %v147
    %v216 = vshrl.u32 %v215, 3
    %v217 = vand.u32 %v215, 7
    %v218 = vsub.s32 0, %v217
    %v219 = vsel %vm213, %v218, %v217
    %vm220 = vcmp.lt.s32.totalorder %v148, 0
    %v221 = vsub.s32 0, %v148
    %v222 = vsel %vm220, %v221, %v148
    %v223 = vshrl.u32 %v222, 3
    %v224 = vand.u32 %v222, 7
    %v225 = vsub.s32 0, %v224
    %v226 = vsel %vm220, %v225, %v224
    %vm227 = vcmp.lt.s32.totalorder %v149, 0
    %v228 = vsub.s32 0, %v149
    %v229 = vsel %vm227, %v228, %v149
    %v230 = vshrl.u32 %v229, 3
    %v231 = vand.u32 %v229, 7
    %v232 = vsub.s32 0, %v231
    %v233 = vsel %vm227, %v232, %v231
    %vm234 = vcmp.lt.s32.totalorder %v150, 0
    %v235 = vsub.s32 0, %v150
    %v236 = vsel %vm234, %v235, %v150
    %v237 = vshrl.u32 %v236, 3
    %v238 = vand.u32 %v236, 7
    %v239 = vsub.s32 0, %v238
    %v240 = vsel %vm234, %v239, %v238
    %vm241 = vcmp.lt.s32.totalorder %v151, 0
    %v242 = vsub.s32 0, %v151
    %v243 = vsel %vm241, %v242, %v151
    %v244 = vshrl.u32 %v243, 3
    %v245 = vand.u32 %v243, 7
    %v246 = vsub.s32 0, %v245
    %v247 = vsel %vm241, %v246, %v245
    %vm248 = vcmp.lt.s32.totalorder %v152, 0
    %v249 = vsub.s32 0, %v152
    %v250 = vsel %vm248, %v249, %v152
    %v251 = vshrl.u32 %v250, 3
    %v252 = vand.u32 %v250, 7
    %v253 = vsub.s32 0, %v252
    %v254 = vsel %vm248, %v253, %v252
    %vm255 = vcmp.lt.s32.totalorder %v153, 0
    %v256 = vsub.s32 0, %v153
    %v257 = vsel %vm255, %v256, %v153
    %v258 = vshrl.u32 %v257, 3
    %v259 = vand.u32 %v257, 7
    %v260 = vsub.s32 0, %v259
    %v261 = vsel %vm255, %v260, %v259
    %vm262 = vcmp.lt.s32.totalorder %v154, 0
    %v263 = vsub.s32 0, %v154
    %v264 = vsel %vm262, %v263, %v154
    %v265 = vshrl.u32 %v264, 3
    %v266 = vand.u32 %v264, 7
    %v267 = vsub.s32 0, %v266
    %v268 = vsel %vm262, %v267, %v266
    %vm269 = vcmp.ne.s32.totalorder %v163, 0
    %vm270 = vcmp.ne.s32.totalorder %v170, 0
    %vm271 = vcmp.ne.s32.totalorder %v177, 0
    %vm272 = vcmp.ne.s32.totalorder %v184, 0
    %vm273 = vcmp.ne.s32.totalorder %v191, 0
    %vm274 = vcmp.ne.s32.totalorder %v198, 0
    %vm275 = vcmp.ne.s32.totalorder %v205, 0
    %vm276 = vcmp.ne.s32.totalorder %v212, 0
    %vm277 = vcmp.ne.s32.totalorder %v219, 0
    %vm278 = vcmp.ne.s32.totalorder %v226, 0
    %vm279 = vcmp.ne.s32.totalorder %v233, 0
    %vm280 = vcmp.ne.s32.totalorder %v240, 0
    %vm281 = vcmp.ne.s32.totalorder %v247, 0
    %vm282 = vcmp.ne.s32.totalorder %v254, 0
    %vm283 = vcmp.ne.s32.totalorder %v261, 0
    %vm284 = vcmp.ne.s32.totalorder %v268, 0
    %vm285 = vcmp.lt.s32.totalorder %v163, 0
    %vm286 = vcmp.lt.s32.totalorder %v170, 0
    %vm287 = vcmp.lt.s32.totalorder %v177, 0
    %vm288 = vcmp.lt.s32.totalorder %v184, 0
    %vm289 = vcmp.lt.s32.totalorder %v191, 0
    %vm290 = vcmp.lt.s32.totalorder %v198, 0
    %vm291 = vcmp.lt.s32.totalorder %v205, 0
    %vm292 = vcmp.lt.s32.totalorder %v212, 0
    %vm293 = vcmp.lt.s32.totalorder %v219, 0
    %vm294 = vcmp.lt.s32.totalorder %v226, 0
    %vm295 = vcmp.lt.s32.totalorder %v233, 0
    %vm296 = vcmp.lt.s32.totalorder %v240, 0
    %vm297 = vcmp.lt.s32.totalorder %v247, 0
    %vm298 = vcmp.lt.s32.totalorder %v254, 0
    %vm299 = vcmp.lt.s32.totalorder %v261, 0
    %vm300 = vcmp.lt.s32.totalorder %v268, 0
    %vm301 = vmand %vm285, %vm269
    %vm302 = vmand %vm286, %vm270
    %vm303 = vmand %vm287, %vm271
    %vm304 = vmand %vm288, %vm272
    %vm305 = vmand %vm289, %vm273
    %vm306 = vmand %vm290, %vm274
    %vm307 = vmand %vm291, %vm275
    %vm308 = vmand %vm292, %vm276
    %vm309 = vmand %vm293, %vm277
    %vm310 = vmand %vm294, %vm278
    %vm311 = vmand %vm295, %vm279
    %vm312 = vmand %vm296, %vm280
    %vm313 = vmand %vm297, %vm281
    %vm314 = vmand %vm298, %vm282
    %vm315 = vmand %vm299, %vm283
    %vm316 = vmand %vm300, %vm284
    %v317 = vadd.s32 %v163, 8
    %v318 = vadd.s32 %v170, 8
    %v319 = vadd.s32 %v177, 8
    %v320 = vadd.s32 %v184, 8
    %v321 = vadd.s32 %v191, 8
    %v322 = vadd.s32 %v198, 8
    %v323 = vadd.s32 %v205, 8
    %v324 = vadd.s32 %v212, 8
    %v325 = vadd.s32 %v219, 8
    %v326 = vadd.s32 %v226, 8
    %v327 = vadd.s32 %v233, 8
    %v328 = vadd.s32 %v240, 8
    %v329 = vadd.s32 %v247, 8
    %v330 = vadd.s32 %v254, 8
    %v331 = vadd.s32 %v261, 8
    %v332 = vadd.s32 %v268, 8
    %v333 = vsel %vm301, %v317, %v163
    %v334 = vsel %vm302, %v318, %v170
    %v335 = vsel %vm303, %v319, %v177
    %v336 = vsel %vm304, %v320, %v184
    %v337 = vsel %vm305, %v321, %v191
    %v338 = vsel %vm306, %v322, %v198
    %v339 = vsel %vm307, %v323, %v205
    %v340 = vsel %vm308, %v324, %v212
    %v341 = vsel %vm309, %v325, %v219
    %v342 = vsel %vm310, %v326, %v226
    %v343 = vsel %vm311, %v327, %v233
    %v344 = vsel %vm312, %v328, %v240
    %v345 = vsel %vm313, %v329, %v247
    %v346 = vsel %vm314, %v330, %v254
    %v347 = vsel %vm315, %v331, %v261
    %v348 = vsel %vm316, %v332, %v268
    %vm349 = vcmp.eq.s32.totalorder %v333, %v156
    %vm350 = vcmp.eq.s32.totalorder %v334, %v156
    %vm351 = vcmp.eq.s32.totalorder %v335, %v156
    %vm352 = vcmp.eq.s32.totalorder %v336, %v156
    %vm353 = vcmp.eq.s32.totalorder %v337, %v156
    %vm354 = vcmp.eq.s32.totalorder %v338, %v156
    %vm355 = vcmp.eq.s32.totalorder %v339, %v156
    %vm356 = vcmp.eq.s32.totalorder %v340, %v156
    %vm357 = vcmp.eq.s32.totalorder %v341, %v156
    %vm358 = vcmp.eq.s32.totalorder %v342, %v156
    %vm359 = vcmp.eq.s32.totalorder %v343, %v156
    %vm360 = vcmp.eq.s32.totalorder %v344, %v156
    %vm361 = vcmp.eq.s32.totalorder %v345, %v156
    %vm362 = vcmp.eq.s32.totalorder %v346, %v156
    %vm363 = vcmp.eq.s32.totalorder %v347, %v156
    %vm364 = vcmp.eq.s32.totalorder %v348, %v156
    %v365 = vsel %vm349, 1.0, 0.0
    %v366 = vsel %vm350, 1.0, 0.0
    %v367 = vsel %vm351, 1.0, 0.0
    %v368 = vsel %vm352, 1.0, 0.0
    %v369 = vsel %vm353, 1.0, 0.0
    %v370 = vsel %vm354, 1.0, 0.0
    %v371 = vsel %vm355, 1.0, 0.0
    %v372 = vsel %vm356, 1.0, 0.0
    %v373 = vsel %vm357, 1.0, 0.0
    %v374 = vsel %vm358, 1.0, 0.0
    %v375 = vsel %vm359, 1.0, 0.0
    %v376 = vsel %vm360, 1.0, 0.0
    %v377 = vsel %vm361, 1.0, 0.0
    %v378 = vsel %vm362, 1.0, 0.0
    %v379 = vsel %vm363, 1.0, 0.0
    %v380 = vsel %vm364, 1.0, 0.0
    %vm381 = vcmp.lt.s32.totalorder %v156, 0
    %v382 = vsub.s32 0, %v156
    %v383 = vsel %vm381, %v382, %v156
    %v384 = vshrl.u32 %v383, 3
    %v385 = vand.u32 %v383, 7
    %v386 = vsub.s32 0, %v385
    %v387 = vsel %vm381, %v386, %v385
    %vm388 = vcmp.ne.s32.totalorder %v387, 0
    %vm389 = vcmp.lt.s32.totalorder %v387, 0
    %vm390 = vmand %vm389, %vm388
    %v391 = vadd.s32 %v387, 8
    %v392 = vsel %vm390, %v391, %v387
    %vm393 = vcmp.eq.s32.totalorder %v83, %v392
    %v394 = vsel %vm393, 1.0, 0.0
    %v395 = vld [vmem:[#allocation2] sm:$0xff]
    %v396 = vld [vmem:[#allocation2 + $0x8] sm:$0xff]
    %v397 = vld [vmem:[#allocation2 + $0x10] sm:$0xff]
    %v398 = vld [vmem:[#allocation2 + $0x18] sm:$0xff]
    %v399 = vpack.c.bf16 %v396, %v395
    %v400 = vpack.c.bf16 %v398, %v397
    %v401 = vld [vmem:[#allocation5 + $0x40] sm:$0xf]
    %v402 = vld [vmem:[#allocation5 + $0x44] sm:$0xf]
    %v403 = vld [vmem:[#allocation5 + $0x48] sm:$0xf]
    %v404 = vld [vmem:[#allocation5 + $0x4c] sm:$0xf]
    %v405 = vld [vmem:[#allocation5 + $0x50] sm:$0xf]
    %v406 = vld [vmem:[#allocation5 + $0x54] sm:$0xf]
    %v407 = vld [vmem:[#allocation5 + $0x58] sm:$0xf]
    %v408 = vld [vmem:[#allocation5 + $0x5c] sm:$0xf]
    %v409 = vld [vmem:[#allocation5 + $0x60] sm:$0xf]
    %v410 = vld [vmem:[#allocation5 + $0x64] sm:$0xf]
    %v411 = vld [vmem:[#allocation5 + $0x68] sm:$0xf]
    %v412 = vld [vmem:[#allocation5 + $0x6c] sm:$0xf]
    %v413 = vld [vmem:[#allocation5 + $0x70] sm:$0xf]
    %v414 = vld [vmem:[#allocation5 + $0x74] sm:$0xf]
    %v415 = vld [vmem:[#allocation5 + $0x78] sm:$0xf]
    %v416 = vld [vmem:[#allocation5 + $0x7c] sm:$0xf]
    %v417 = vrot.slane %v395, 7
    %v418 = vrot.slane %v396, 7
    %v419 = vrot.slane %v397, 7
    %v420 = vrot.slane %v398, 7
    %vm421 = vcmp.lt.s32.totalorder %v83, 1
    %v422 = vsel %vm421, %v419, %v420
    %v423 = vsel %vm421, %v418, %v419
    %v424 = vsel %vm421, %v417, %v418
    %v425 = vsel %vm421, %v420, %v417
    %v426 = vsel %vm135, 1, 0
    %v427 = vsel %vm136, 1, 0
    %v428 = vsel %vm137, 1, 0
    %v429 = vsel %vm138, 1, 0
    %vm430 = vcmp.eq.s32.totalorder %v426, 1
    %vm431 = vcmp.eq.s32.totalorder %v427, 1
    %vm432 = vcmp.eq.s32.totalorder %v428, 1
    %vm433 = vcmp.eq.s32.totalorder %v429, 1
    %v434 = vsel %vm430, %v425, 0.0
    %v435 = vsel %vm431, %v424, 0.0
    %v436 = vsel %vm432, %v423, 0.0
    %v437 = vsel %vm433, %v422, 0.0
    %v438 = vpack.c.bf16 %v435, %v434
    %v439 = vpack.c.bf16 %v437, %v436
    %v440 = vld [vmem:[#allocation5] sm:$0xf]
    %v441 = vld [vmem:[#allocation5 + $0x4] sm:$0xf]
    %v442 = vld [vmem:[#allocation5 + $0x8] sm:$0xf]
    %v443 = vld [vmem:[#allocation5 + $0xc] sm:$0xf]
    %v444 = vld [vmem:[#allocation5 + $0x10] sm:$0xf]
    %v445 = vld [vmem:[#allocation5 + $0x14] sm:$0xf]
    %v446 = vld [vmem:[#allocation5 + $0x18] sm:$0xf]
    %v447 = vld [vmem:[#allocation5 + $0x1c] sm:$0xf]
    %v448 = vld [vmem:[#allocation5 + $0x20] sm:$0xf]
    %v449 = vld [vmem:[#allocation5 + $0x24] sm:$0xf]
    %v450 = vld [vmem:[#allocation5 + $0x28] sm:$0xf]
    %v451 = vld [vmem:[#allocation5 + $0x2c] sm:$0xf]
    %v452 = vld [vmem:[#allocation5 + $0x30] sm:$0xf]
    %v453 = vld [vmem:[#allocation5 + $0x34] sm:$0xf]
    %v454 = vld [vmem:[#allocation5 + $0x38] sm:$0xf]
    %v455 = vld [vmem:[#allocation5 + $0x3c] sm:$0xf]
    %v472 = vunpack.c.l.b16 %v440
    %v473 = vunpack.c.l.b16 %v441
    %v474 = vunpack.c.l.b16 %v442
    %v475 = vunpack.c.l.b16 %v443
    %v476 = vunpack.c.l.b16 %v444
    %v477 = vunpack.c.l.b16 %v445
    %v478 = vunpack.c.l.b16 %v446
    %v479 = vunpack.c.l.b16 %v447
    %v480 = vunpack.c.l.b16 %v448
    %v481 = vunpack.c.l.b16 %v449
    %v482 = vunpack.c.l.b16 %v450
    %v483 = vunpack.c.l.b16 %v451
    %v484 = vunpack.c.l.b16 %v452
    %v485 = vunpack.c.l.b16 %v453
    %v486 = vunpack.c.l.b16 %v454
    %v487 = vunpack.c.l.b16 %v455
    %v488 = vpack.c.b16 %v473, %v472
    %v489 = vpack.c.b16 %v475, %v474
    %v490 = vpack.c.b16 %v477, %v476
    %v491 = vpack.c.b16 %v479, %v478
    %v492 = vpack.c.b16 %v481, %v480
    %v493 = vpack.c.b16 %v483, %v482
    %v494 = vpack.c.b16 %v485, %v484
    %v495 = vpack.c.b16 %v487, %v486
    %504 = vmatpush.bf16.msra.mxu0 %v495
    %505 = vmatpush.bf16.msra.mxu0 %v494
    %506 = vmatpush.bf16.msra.mxu0 %v493
    %507 = vmatpush.bf16.msra.mxu0 %v492
    %508 = vmatpush.bf16.msra.mxu0 %v491
    %509 = vmatpush.bf16.msra.mxu0 %v490
    %510 = vmatpush.bf16.msra.mxu0 %v489
    %511 = vmatpush.bf16.msra.mxu0 %v488
    %512 = vmatmul.bf16.gmra.mxu0 %v438
    %v513 = vpop.f32.mrf.mxu0
    %v514 = vadd.f32 0.0, %v513
    %v515 = vpop.f32.mrf.mxu0
    %v516 = vadd.f32 0.0, %v515
    %517 = vmatmul.bf16.gmra.mxu0 %v439
    %v518 = vpop.f32.mrf.mxu0
    %v519 = vadd.f32 0.0, %v518
    %v520 = vpop.f32.mrf.mxu0
    %v521 = vadd.f32 0.0, %v520
    %522 = vdwg.mxu0
    %v539 = vunpack.c.l.b16 %v401
    %v540 = vunpack.c.l.b16 %v402
    %v541 = vunpack.c.l.b16 %v403
    %v542 = vunpack.c.l.b16 %v404
    %v543 = vunpack.c.l.b16 %v405
    %v544 = vunpack.c.l.b16 %v406
    %v545 = vunpack.c.l.b16 %v407
    %v546 = vunpack.c.l.b16 %v408
    %v547 = vunpack.c.l.b16 %v409
    %v548 = vunpack.c.l.b16 %v410
    %v549 = vunpack.c.l.b16 %v411
    %v550 = vunpack.c.l.b16 %v412
    %v551 = vunpack.c.l.b16 %v413
    %v552 = vunpack.c.l.b16 %v414
    %v553 = vunpack.c.l.b16 %v415
    %v554 = vunpack.c.l.b16 %v416
    %v555 = vpack.c.b16 %v540, %v539
    %v556 = vpack.c.b16 %v542, %v541
    %v557 = vpack.c.b16 %v544, %v543
    %v558 = vpack.c.b16 %v546, %v545
    %v559 = vpack.c.b16 %v548, %v547
    %v560 = vpack.c.b16 %v550, %v549
    %v561 = vpack.c.b16 %v552, %v551
    %v562 = vpack.c.b16 %v554, %v553
    %571 = vmatpush.bf16.msra.mxu0 %v562
    %572 = vmatpush.bf16.msra.mxu0 %v561
    %573 = vmatpush.bf16.msra.mxu0 %v560
    %574 = vmatpush.bf16.msra.mxu0 %v559
    %575 = vmatpush.bf16.msra.mxu0 %v558
    %576 = vmatpush.bf16.msra.mxu0 %v557
    %577 = vmatpush.bf16.msra.mxu0 %v556
    %578 = vmatpush.bf16.msra.mxu0 %v555
    %579 = vmatmul.bf16.gmra.mxu0 %v399
    %v580 = vpop.f32.mrf.mxu0
    %v581 = vadd.f32 %v514, %v580
    %v582 = vpop.f32.mrf.mxu0
    %v583 = vadd.f32 %v516, %v582
    %584 = vmatmul.bf16.gmra.mxu0 %v400
    %v585 = vpop.f32.mrf.mxu0
    %v586 = vadd.f32 %v519, %v585
    %v587 = vpop.f32.mrf.mxu0
    %v588 = vadd.f32 %v521, %v587
    %589 = vdwg.mxu0
    %v590 = vrot.slane %v395, 1
    %v591 = vrot.slane %v396, 1
    %v592 = vrot.slane %v397, 1
    %v593 = vrot.slane %v398, 1
    %vm594 = vcmp.lt.s32.totalorder %v83, 7
    %v595 = vsel %vm594, %v592, %v593
    %v596 = vsel %vm594, %v591, %v592
    %v597 = vsel %vm594, %v590, %v591
    %v598 = vsel %vm594, %v593, %v590
    %v599 = vsel %vm139, 1, 0
    %v600 = vsel %vm140, 1, 0
    %v601 = vsel %vm141, 1, 0
    %v602 = vsel %vm142, 1, 0
    %vm603 = vcmp.eq.s32.totalorder %v599, 1
    %vm604 = vcmp.eq.s32.totalorder %v600, 1
    %vm605 = vcmp.eq.s32.totalorder %v601, 1
    %vm606 = vcmp.eq.s32.totalorder %v602, 1
    %v607 = vsel %vm603, %v597, 0.0
    %v608 = vsel %vm604, %v596, 0.0
    %v609 = vsel %vm605, %v595, 0.0
    %v610 = vsel %vm606, %v598, 0.0
    %v611 = vpack.c.bf16 %v608, %v607
    %v612 = vpack.c.bf16 %v610, %v609
    %v613 = vld [vmem:[#allocation5 + $0x80] sm:$0xf]
    %v614 = vld [vmem:[#allocation5 + $0x84] sm:$0xf]
    %v615 = vld [vmem:[#allocation5 + $0x88] sm:$0xf]
    %v616 = vld [vmem:[#allocation5 + $0x8c] sm:$0xf]
    %v617 = vld [vmem:[#allocation5 + $0x90] sm:$0xf]
    %v618 = vld [vmem:[#allocation5 + $0x94] sm:$0xf]
    %v619 = vld [vmem:[#allocation5 + $0x98] sm:$0xf]
    %v620 = vld [vmem:[#allocation5 + $0x9c] sm:$0xf]
    %v621 = vld [vmem:[#allocation5 + $0xa0] sm:$0xf]
    %v622 = vld [vmem:[#allocation5 + $0xa4] sm:$0xf]
    %v623 = vld [vmem:[#allocation5 + $0xa8] sm:$0xf]
    %v624 = vld [vmem:[#allocation5 + $0xac] sm:$0xf]
    %v625 = vld [vmem:[#allocation5 + $0xb0] sm:$0xf]
    %v626 = vld [vmem:[#allocation5 + $0xb4] sm:$0xf]
    %v627 = vld [vmem:[#allocation5 + $0xb8] sm:$0xf]
    %v628 = vld [vmem:[#allocation5 + $0xbc] sm:$0xf]
    %v645 = vunpack.c.l.b16 %v613
    %v646 = vunpack.c.l.b16 %v614
    %v647 = vunpack.c.l.b16 %v615
    %v648 = vunpack.c.l.b16 %v616
    %v649 = vunpack.c.l.b16 %v617
    %v650 = vunpack.c.l.b16 %v618
    %v651 = vunpack.c.l.b16 %v619
    %v652 = vunpack.c.l.b16 %v620
    %v653 = vunpack.c.l.b16 %v621
    %v654 = vunpack.c.l.b16 %v622
    %v655 = vunpack.c.l.b16 %v623
    %v656 = vunpack.c.l.b16 %v624
    %v657 = vunpack.c.l.b16 %v625
    %v658 = vunpack.c.l.b16 %v626
    %v659 = vunpack.c.l.b16 %v627
    %v660 = vunpack.c.l.b16 %v628
    %v661 = vpack.c.b16 %v646, %v645
    %v662 = vpack.c.b16 %v648, %v647
    %v663 = vpack.c.b16 %v650, %v649
    %v664 = vpack.c.b16 %v652, %v651
    %v665 = vpack.c.b16 %v654, %v653
    %v666 = vpack.c.b16 %v656, %v655
    %v667 = vpack.c.b16 %v658, %v657
    %v668 = vpack.c.b16 %v660, %v659
    %677 = vmatpush.bf16.msra.mxu0 %v668
    %678 = vmatpush.bf16.msra.mxu0 %v667
    %679 = vmatpush.bf16.msra.mxu0 %v666
    %680 = vmatpush.bf16.msra.mxu0 %v665
    %681 = vmatpush.bf16.msra.mxu0 %v664
    %682 = vmatpush.bf16.msra.mxu0 %v663
    %683 = vmatpush.bf16.msra.mxu0 %v662
    %684 = vmatpush.bf16.msra.mxu0 %v661
    %685 = vmatmul.bf16.gmra.mxu0 %v611
    %v686 = vpop.f32.mrf.mxu0
    %v687 = vadd.f32 0.0, %v686
    %v688 = vpop.f32.mrf.mxu0
    %v689 = vadd.f32 0.0, %v688
    %690 = vmatmul.bf16.gmra.mxu0 %v612
    %v691 = vpop.f32.mrf.mxu0
    %v692 = vadd.f32 0.0, %v691
    %v693 = vpop.f32.mrf.mxu0
    %v694 = vadd.f32 0.0, %v693
    %695 = vdwg.mxu0
    %v696 = vadd.f32 %v581, %v687
    %v697 = vadd.f32 %v583, %v689
    %v698 = vadd.f32 %v586, %v692
    %v699 = vadd.f32 %v588, %v694
    %v700 = vadd.f32 %v696, %v697
    %v701 = vadd.f32 %v700, %v698
    %v702 = vadd.f32 %v701, %v699
    %v703 = vrot.slane %v702, 4
    %v704 = vadd.f32 %v702, %v703
    %v705 = vrot.slane %v704, 2
    %v706 = vadd.f32 %v704, %v705
    %v707 = vrot.slane %v706, 1
    %v708 = vadd.f32 %v706, %v707
    %v709 = vmul.f32 %v696, %v696
    %v710 = vmul.f32 %v697, %v697
    %v711 = vmul.f32 %v698, %v698
    %v712 = vmul.f32 %v699, %v699
    %v713 = vadd.f32 %v709, %v710
    %v714 = vadd.f32 %v713, %v711
    %v715 = vadd.f32 %v714, %v712
    %v716 = vrot.slane %v715, 4
    %v717 = vadd.f32 %v715, %v716
    %v718 = vrot.slane %v717, 2
    %v719 = vadd.f32 %v717, %v718
    %v720 = vrot.slane %v719, 1
    %v721 = vadd.f32 %v719, %v720
    %vm722 = vcmask 1040384
    %v723 = vsel %vm722, %v708, %v721
    %724 = vmatpush.msra.mxu0 %v380
    %725 = vmatpush.msra.mxu0 %v379
    %726 = vmatpush.msra.mxu0 %v378
    %727 = vmatpush.msra.mxu0 %v377
    %728 = vmatpush.msra.mxu0 %v376
    %729 = vmatpush.msra.mxu0 %v375
    %730 = vmatpush.msra.mxu0 %v374
    %731 = vmatpush.msra.mxu0 %v373
    %732 = vmatpush.msra.mxu0 %v372
    %733 = vmatpush.msra.mxu0 %v371
    %734 = vmatpush.msra.mxu0 %v370
    %735 = vmatpush.msra.mxu0 %v369
    %736 = vmatpush.msra.mxu0 %v368
    %737 = vmatpush.msra.mxu0 %v367
    %738 = vmatpush.msra.mxu0 %v366
    %739 = vmatpush.msra.mxu0 %v365
    %740 = vmatmul.f32.gmra.mxu0 %v723
    %v741 = vpop.f32.mrf.mxu0
    %v742 = vadd.f32 0.0, %v741
    %743 = vdwg.mxu0
    %v744 = vmul.f32 %v742, 0.001953125
    %v745 = vmul.f32 %v744, %v744
    %v747 = vrot.slane %v745, 7
    %v749 = vsub.f32 %v744, %v747
    %v750 = vmax.f32 %v749, 0.0
    %v751 = vld [vmem:[#allocation7] sm:$0x1]
    %v752 = vadd.f32 %v750, 1e-05
    %v753 = vrsqrt.pop %v752
    %v754 = vmul.f32 %v753, %v752
    %v755 = vmul.f32 %v754, %v753
    %v756 = vmul.f32 0.5, %v755
    %v757 = vsub.f32 1.5, %v756
    %v758 = vmul.f32 %v753, %v757
    %vm759 = vweird.f32 %v752
    %vm760 = vweird.f32 %v753
    %vm761 = vmor %vm759, %vm760
    %v762 = vsel %vm761, %v753, %v758
    %v764 = vrot.slane %v762, 1
    %v766 = vmul.f32 %v751, %v764
    %v767 = vld [vmem:[#allocation7 + $0x1] sm:$0x1]
    %v768 = vmul.f32 %v744, %v766
    %v769 = vsub.f32 %v767, %v768
    %v771 = vrot.slane %v769, 7
    %v773 = vsel %vm722, %v766, %v771
    %vm774 = vcmask 64512
    %v776 = vsel %vm774, %v773, 0
    %778 = vmatpush.msra.mxu0 0.0
    %779 = vmatpush.msra.mxu0 0.0
    %780 = vmatpush.msra.mxu0 0.0
    %781 = vmatpush.msra.mxu0 0.0
    %782 = vmatpush.msra.mxu0 0.0
    %783 = vmatpush.msra.mxu0 0.0
    %784 = vmatpush.msra.mxu0 0.0
    %785 = vmatpush.msra.mxu0 0.0
    %786 = vmatpush.msra.mxu0 0.0
    %787 = vmatpush.msra.mxu0 0.0
    %788 = vmatpush.msra.mxu0 0.0
    %789 = vmatpush.msra.mxu0 0.0
    %790 = vmatpush.msra.mxu0 0.0
    %791 = vmatpush.msra.mxu0 0.0
    %792 = vmatpush.msra.mxu0 0.0
    %793 = vmatpush.msra.mxu0 %v394
    %794 = vmatmul.f32.gmra.mxu0 %v776
    %v795 = vpop.f32.mrf.mxu0
    %v796 = vadd.f32 0.0, %v795
    %797 = vdwg.mxu0
    %v798 = vperm.slane %v796, 0
    %v799 = vmul.f32 %v696, %v798
    %v800 = vmul.f32 %v697, %v798
    %v801 = vmul.f32 %v698, %v798
    %v802 = vmul.f32 %v699, %v798
    %v803 = vperm.slane %v796, 1
    %v804 = vadd.f32 %v799, %v803
    %v805 = vadd.f32 %v800, %v803
    %v806 = vadd.f32 %v801, %v803
    %v807 = vadd.f32 %v802, %v803
    %v808 = vmax.f32 %v804, 0.0
    %v809 = vmax.f32 %v805, 0.0
    %v810 = vmax.f32 %v806, 0.0
    %v811 = vmax.f32 %v807, 0.0
    %v812 = vpack.c.bf16 %v809, %v808
    %v813 = vpack.c.bf16 %v811, %v810
    %v814 = vld [vmem:[#allocation8 + $0x40] sm:$0xf]
    %v815 = vld [vmem:[#allocation8 + $0x44] sm:$0xf]
    %v816 = vld [vmem:[#allocation8 + $0x48] sm:$0xf]
    %v817 = vld [vmem:[#allocation8 + $0x4c] sm:$0xf]
    %v818 = vld [vmem:[#allocation8 + $0x50] sm:$0xf]
    %v819 = vld [vmem:[#allocation8 + $0x54] sm:$0xf]
    %v820 = vld [vmem:[#allocation8 + $0x58] sm:$0xf]
    %v821 = vld [vmem:[#allocation8 + $0x5c] sm:$0xf]
    %v822 = vld [vmem:[#allocation8 + $0x60] sm:$0xf]
    %v823 = vld [vmem:[#allocation8 + $0x64] sm:$0xf]
    %v824 = vld [vmem:[#allocation8 + $0x68] sm:$0xf]
    %v825 = vld [vmem:[#allocation8 + $0x6c] sm:$0xf]
    %v826 = vld [vmem:[#allocation8 + $0x70] sm:$0xf]
    %v827 = vld [vmem:[#allocation8 + $0x74] sm:$0xf]
    %v828 = vld [vmem:[#allocation8 + $0x78] sm:$0xf]
    %v829 = vld [vmem:[#allocation8 + $0x7c] sm:$0xf]
    %v830 = vrot.slane %v808, 7
    %v831 = vrot.slane %v809, 7
    %v832 = vrot.slane %v810, 7
    %v833 = vrot.slane %v811, 7
    %v834 = vsel %vm421, %v832, %v833
    %v835 = vsel %vm421, %v831, %v832
    %v836 = vsel %vm421, %v830, %v831
    %v837 = vsel %vm421, %v833, %v830
    %v838 = vsel %vm430, %v837, 0.0
    %v839 = vsel %vm431, %v836, 0.0
    %v840 = vsel %vm432, %v835, 0.0
    %v841 = vsel %vm433, %v834, 0.0
    %v842 = vpack.c.bf16 %v839, %v838
    %v843 = vpack.c.bf16 %v841, %v840
    %v844 = vld [vmem:[#allocation8] sm:$0xf]
    %v845 = vld [vmem:[#allocation8 + $0x4] sm:$0xf]
    %v846 = vld [vmem:[#allocation8 + $0x8] sm:$0xf]
    %v847 = vld [vmem:[#allocation8 + $0xc] sm:$0xf]
    %v848 = vld [vmem:[#allocation8 + $0x10] sm:$0xf]
    %v849 = vld [vmem:[#allocation8 + $0x14] sm:$0xf]
    %v850 = vld [vmem:[#allocation8 + $0x18] sm:$0xf]
    %v851 = vld [vmem:[#allocation8 + $0x1c] sm:$0xf]
    %v852 = vld [vmem:[#allocation8 + $0x20] sm:$0xf]
    %v853 = vld [vmem:[#allocation8 + $0x24] sm:$0xf]
    %v854 = vld [vmem:[#allocation8 + $0x28] sm:$0xf]
    %v855 = vld [vmem:[#allocation8 + $0x2c] sm:$0xf]
    %v856 = vld [vmem:[#allocation8 + $0x30] sm:$0xf]
    %v857 = vld [vmem:[#allocation8 + $0x34] sm:$0xf]
    %v858 = vld [vmem:[#allocation8 + $0x38] sm:$0xf]
    %v859 = vld [vmem:[#allocation8 + $0x3c] sm:$0xf]
    %v876 = vunpack.c.l.b16 %v844
    %v877 = vunpack.c.l.b16 %v845
    %v878 = vunpack.c.l.b16 %v846
    %v879 = vunpack.c.l.b16 %v847
    %v880 = vunpack.c.l.b16 %v848
    %v881 = vunpack.c.l.b16 %v849
    %v882 = vunpack.c.l.b16 %v850
    %v883 = vunpack.c.l.b16 %v851
    %v884 = vunpack.c.l.b16 %v852
    %v885 = vunpack.c.l.b16 %v853
    %v886 = vunpack.c.l.b16 %v854
    %v887 = vunpack.c.l.b16 %v855
    %v888 = vunpack.c.l.b16 %v856
    %v889 = vunpack.c.l.b16 %v857
    %v890 = vunpack.c.l.b16 %v858
    %v891 = vunpack.c.l.b16 %v859
    %v892 = vpack.c.b16 %v877, %v876
    %v893 = vpack.c.b16 %v879, %v878
    %v894 = vpack.c.b16 %v881, %v880
    %v895 = vpack.c.b16 %v883, %v882
    %v896 = vpack.c.b16 %v885, %v884
    %v897 = vpack.c.b16 %v887, %v886
    %v898 = vpack.c.b16 %v889, %v888
    %v899 = vpack.c.b16 %v891, %v890
    %908 = vmatpush.bf16.msra.mxu0 %v899
    %909 = vmatpush.bf16.msra.mxu0 %v898
    %910 = vmatpush.bf16.msra.mxu0 %v897
    %911 = vmatpush.bf16.msra.mxu0 %v896
    %912 = vmatpush.bf16.msra.mxu0 %v895
    %913 = vmatpush.bf16.msra.mxu0 %v894
    %914 = vmatpush.bf16.msra.mxu0 %v893
    %915 = vmatpush.bf16.msra.mxu0 %v892
    %916 = vmatmul.bf16.gmra.mxu0 %v842
    %v917 = vpop.f32.mrf.mxu0
    %v918 = vadd.f32 0.0, %v917
    %v919 = vpop.f32.mrf.mxu0
    %v920 = vadd.f32 0.0, %v919
    %921 = vmatmul.bf16.gmra.mxu0 %v843
    %v922 = vpop.f32.mrf.mxu0
    %v923 = vadd.f32 0.0, %v922
    %v924 = vpop.f32.mrf.mxu0
    %v925 = vadd.f32 0.0, %v924
    %926 = vdwg.mxu0
    %v943 = vunpack.c.l.b16 %v814
    %v944 = vunpack.c.l.b16 %v815
    %v945 = vunpack.c.l.b16 %v816
    %v946 = vunpack.c.l.b16 %v817
    %v947 = vunpack.c.l.b16 %v818
    %v948 = vunpack.c.l.b16 %v819
    %v949 = vunpack.c.l.b16 %v820
    %v950 = vunpack.c.l.b16 %v821
    %v951 = vunpack.c.l.b16 %v822
    %v952 = vunpack.c.l.b16 %v823
    %v953 = vunpack.c.l.b16 %v824
    %v954 = vunpack.c.l.b16 %v825
    %v955 = vunpack.c.l.b16 %v826
    %v956 = vunpack.c.l.b16 %v827
    %v957 = vunpack.c.l.b16 %v828
    %v958 = vunpack.c.l.b16 %v829
    %v959 = vpack.c.b16 %v944, %v943
    %v960 = vpack.c.b16 %v946, %v945
    %v961 = vpack.c.b16 %v948, %v947
    %v962 = vpack.c.b16 %v950, %v949
    %v963 = vpack.c.b16 %v952, %v951
    %v964 = vpack.c.b16 %v954, %v953
    %v965 = vpack.c.b16 %v956, %v955
    %v966 = vpack.c.b16 %v958, %v957
    %975 = vmatpush.bf16.msra.mxu0 %v966
    %976 = vmatpush.bf16.msra.mxu0 %v965
    %977 = vmatpush.bf16.msra.mxu0 %v964
    %978 = vmatpush.bf16.msra.mxu0 %v963
    %979 = vmatpush.bf16.msra.mxu0 %v962
    %980 = vmatpush.bf16.msra.mxu0 %v961
    %981 = vmatpush.bf16.msra.mxu0 %v960
    %982 = vmatpush.bf16.msra.mxu0 %v959
    %983 = vmatmul.bf16.gmra.mxu0 %v812
    %v984 = vpop.f32.mrf.mxu0
    %v985 = vadd.f32 %v918, %v984
    %v986 = vpop.f32.mrf.mxu0
    %v987 = vadd.f32 %v920, %v986
    %988 = vmatmul.bf16.gmra.mxu0 %v813
    %v989 = vpop.f32.mrf.mxu0
    %v990 = vadd.f32 %v923, %v989
    %v991 = vpop.f32.mrf.mxu0
    %v992 = vadd.f32 %v925, %v991
    %993 = vdwg.mxu0
    %v994 = vrot.slane %v808, 1
    %v995 = vrot.slane %v809, 1
    %v996 = vrot.slane %v810, 1
    %v997 = vrot.slane %v811, 1
    %v998 = vsel %vm594, %v996, %v997
    %v999 = vsel %vm594, %v995, %v996
    %v1000 = vsel %vm594, %v994, %v995
    %v1001 = vsel %vm594, %v997, %v994
    %v1002 = vsel %vm603, %v1000, 0.0
    %v1003 = vsel %vm604, %v999, 0.0
    %v1004 = vsel %vm605, %v998, 0.0
    %v1005 = vsel %vm606, %v1001, 0.0
    %v1006 = vpack.c.bf16 %v1003, %v1002
    %v1007 = vpack.c.bf16 %v1005, %v1004
    %v1008 = vld [vmem:[#allocation8 + $0x80] sm:$0xf]
    %v1009 = vld [vmem:[#allocation8 + $0x84] sm:$0xf]
    %v1010 = vld [vmem:[#allocation8 + $0x88] sm:$0xf]
    %v1011 = vld [vmem:[#allocation8 + $0x8c] sm:$0xf]
    %v1012 = vld [vmem:[#allocation8 + $0x90] sm:$0xf]
    %v1013 = vld [vmem:[#allocation8 + $0x94] sm:$0xf]
    %v1014 = vld [vmem:[#allocation8 + $0x98] sm:$0xf]
    %v1015 = vld [vmem:[#allocation8 + $0x9c] sm:$0xf]
    %v1016 = vld [vmem:[#allocation8 + $0xa0] sm:$0xf]
    %v1017 = vld [vmem:[#allocation8 + $0xa4] sm:$0xf]
    %v1018 = vld [vmem:[#allocation8 + $0xa8] sm:$0xf]
    %v1019 = vld [vmem:[#allocation8 + $0xac] sm:$0xf]
    %v1020 = vld [vmem:[#allocation8 + $0xb0] sm:$0xf]
    %v1021 = vld [vmem:[#allocation8 + $0xb4] sm:$0xf]
    %v1022 = vld [vmem:[#allocation8 + $0xb8] sm:$0xf]
    %v1023 = vld [vmem:[#allocation8 + $0xbc] sm:$0xf]
    %v1040 = vunpack.c.l.b16 %v1008
    %v1041 = vunpack.c.l.b16 %v1009
    %v1042 = vunpack.c.l.b16 %v1010
    %v1043 = vunpack.c.l.b16 %v1011
    %v1044 = vunpack.c.l.b16 %v1012
    %v1045 = vunpack.c.l.b16 %v1013
    %v1046 = vunpack.c.l.b16 %v1014
    %v1047 = vunpack.c.l.b16 %v1015
    %v1048 = vunpack.c.l.b16 %v1016
    %v1049 = vunpack.c.l.b16 %v1017
    %v1050 = vunpack.c.l.b16 %v1018
    %v1051 = vunpack.c.l.b16 %v1019
    %v1052 = vunpack.c.l.b16 %v1020
    %v1053 = vunpack.c.l.b16 %v1021
    %v1054 = vunpack.c.l.b16 %v1022
    %v1055 = vunpack.c.l.b16 %v1023
    %v1056 = vpack.c.b16 %v1041, %v1040
    %v1057 = vpack.c.b16 %v1043, %v1042
    %v1058 = vpack.c.b16 %v1045, %v1044
    %v1059 = vpack.c.b16 %v1047, %v1046
    %v1060 = vpack.c.b16 %v1049, %v1048
    %v1061 = vpack.c.b16 %v1051, %v1050
    %v1062 = vpack.c.b16 %v1053, %v1052
    %v1063 = vpack.c.b16 %v1055, %v1054
    %1072 = vmatpush.bf16.msra.mxu0 %v1063
    %1073 = vmatpush.bf16.msra.mxu0 %v1062
    %1074 = vmatpush.bf16.msra.mxu0 %v1061
    %1075 = vmatpush.bf16.msra.mxu0 %v1060
    %1076 = vmatpush.bf16.msra.mxu0 %v1059
    %1077 = vmatpush.bf16.msra.mxu0 %v1058
    %1078 = vmatpush.bf16.msra.mxu0 %v1057
    %1079 = vmatpush.bf16.msra.mxu0 %v1056
    %1080 = vmatmul.bf16.gmra.mxu0 %v1006
    %v1081 = vpop.f32.mrf.mxu0
    %v1082 = vadd.f32 0.0, %v1081
    %v1083 = vpop.f32.mrf.mxu0
    %v1084 = vadd.f32 0.0, %v1083
    %1085 = vmatmul.bf16.gmra.mxu0 %v1007
    %v1086 = vpop.f32.mrf.mxu0
    %v1087 = vadd.f32 0.0, %v1086
    %v1088 = vpop.f32.mrf.mxu0
    %v1089 = vadd.f32 0.0, %v1088
    %1090 = vdwg.mxu0
    %v1091 = vadd.f32 %v985, %v1082
    %v1092 = vadd.f32 %v987, %v1084
    %v1093 = vadd.f32 %v990, %v1087
    %v1094 = vadd.f32 %v992, %v1089
    %v1095 = vadd.f32 %v1091, %v1092
    %v1096 = vadd.f32 %v1095, %v1093
    %v1097 = vadd.f32 %v1096, %v1094
    %v1098 = vrot.slane %v1097, 4
    %v1099 = vadd.f32 %v1097, %v1098
    %v1100 = vrot.slane %v1099, 2
    %v1101 = vadd.f32 %v1099, %v1100
    %v1102 = vrot.slane %v1101, 1
    %v1103 = vadd.f32 %v1101, %v1102
    %v1104 = vmul.f32 %v1091, %v1091
    %v1105 = vmul.f32 %v1092, %v1092
    %v1106 = vmul.f32 %v1093, %v1093
    %v1107 = vmul.f32 %v1094, %v1094
    %v1108 = vadd.f32 %v1104, %v1105
    %v1109 = vadd.f32 %v1108, %v1106
    %v1110 = vadd.f32 %v1109, %v1107
    %v1111 = vrot.slane %v1110, 4
    %v1112 = vadd.f32 %v1110, %v1111
    %v1113 = vrot.slane %v1112, 2
    %v1114 = vadd.f32 %v1112, %v1113
    %v1115 = vrot.slane %v1114, 1
    %v1116 = vadd.f32 %v1114, %v1115
    %v1117 = vsel %vm722, %v1103, %v1116
    %1118 = vmatpush.msra.mxu0 %v380
    %1119 = vmatpush.msra.mxu0 %v379
    %1120 = vmatpush.msra.mxu0 %v378
    %1121 = vmatpush.msra.mxu0 %v377
    %1122 = vmatpush.msra.mxu0 %v376
    %1123 = vmatpush.msra.mxu0 %v375
    %1124 = vmatpush.msra.mxu0 %v374
    %1125 = vmatpush.msra.mxu0 %v373
    %1126 = vmatpush.msra.mxu0 %v372
    %1127 = vmatpush.msra.mxu0 %v371
    %1128 = vmatpush.msra.mxu0 %v370
    %1129 = vmatpush.msra.mxu0 %v369
    %1130 = vmatpush.msra.mxu0 %v368
    %1131 = vmatpush.msra.mxu0 %v367
    %1132 = vmatpush.msra.mxu0 %v366
    %1133 = vmatpush.msra.mxu0 %v365
    %1134 = vmatmul.f32.gmra.mxu0 %v1117
    %v1135 = vpop.f32.mrf.mxu0
    %v1136 = vadd.f32 0.0, %v1135
    %1137 = vdwg.mxu0
    %v1138 = vmul.f32 %v1136, 0.001953125
    %v1139 = vmul.f32 %v1138, %v1138
    %v1141 = vrot.slane %v1139, 7
    %v1143 = vsub.f32 %v1138, %v1141
    %v1144 = vmax.f32 %v1143, 0.0
    %v1145 = vld [vmem:[%s4] sm:$0x1]
    %v1146 = vadd.f32 %v1144, 1e-05
    %v1147 = vrsqrt.pop %v1146
    %v1148 = vmul.f32 %v1147, %v1146
    %v1149 = vmul.f32 %v1148, %v1147
    %v1150 = vmul.f32 0.5, %v1149
    %v1151 = vsub.f32 1.5, %v1150
    %v1152 = vmul.f32 %v1147, %v1151
    %vm1153 = vweird.f32 %v1146
    %vm1154 = vweird.f32 %v1147
    %vm1155 = vmor %vm1153, %vm1154
    %v1156 = vsel %vm1155, %v1147, %v1152
    %v1158 = vrot.slane %v1156, 1
    %v1160 = vmul.f32 %v1145, %v1158
    %v1161 = vld [vmem:[%s4 + $0x1] sm:$0x1]
    %v1162 = vmul.f32 %v1138, %v1160
    %v1163 = vsub.f32 %v1161, %v1162
    %v1165 = vrot.slane %v1163, 7
    %v1167 = vsel %vm722, %v1160, %v1165
    %v1169 = vsel %vm774, %v1167, 0
    %1171 = vmatpush.msra.mxu0 0.0
    %1172 = vmatpush.msra.mxu0 0.0
    %1173 = vmatpush.msra.mxu0 0.0
    %1174 = vmatpush.msra.mxu0 0.0
    %1175 = vmatpush.msra.mxu0 0.0
    %1176 = vmatpush.msra.mxu0 0.0
    %1177 = vmatpush.msra.mxu0 0.0
    %1178 = vmatpush.msra.mxu0 0.0
    %1179 = vmatpush.msra.mxu0 0.0
    %1180 = vmatpush.msra.mxu0 0.0
    %1181 = vmatpush.msra.mxu0 0.0
    %1182 = vmatpush.msra.mxu0 0.0
    %1183 = vmatpush.msra.mxu0 0.0
    %1184 = vmatpush.msra.mxu0 0.0
    %1185 = vmatpush.msra.mxu0 0.0
    %1186 = vmatpush.msra.mxu0 %v394
    %1187 = vmatmul.f32.gmra.mxu0 %v1169
    %v1188 = vpop.f32.mrf.mxu0
    %v1189 = vadd.f32 0.0, %v1188
    %1190 = vdwg.mxu0
    %v1191 = vperm.slane %v1189, 0
    %v1192 = vmul.f32 %v1091, %v1191
    %v1193 = vmul.f32 %v1092, %v1191
    %v1194 = vmul.f32 %v1093, %v1191
    %v1195 = vmul.f32 %v1094, %v1191
    %v1196 = vperm.slane %v1189, 1
    %v1197 = vadd.f32 %v1192, %v1196
    %v1198 = vadd.f32 %v1193, %v1196
    %v1199 = vadd.f32 %v1194, %v1196
    %v1200 = vadd.f32 %v1195, %v1196
    %v1201 = vadd.f32 %v1197, %v395
    %v1202 = vadd.f32 %v1198, %v396
    %v1203 = vadd.f32 %v1199, %v397
    %v1204 = vadd.f32 %v1200, %v398
    %v1205 = vmax.f32 %v1201, 0.0
    %v1206 = vmax.f32 %v1202, 0.0
    %v1207 = vmax.f32 %v1203, 0.0
    %v1208 = vmax.f32 %v1204, 0.0
    %1209 = vst [vmem:[#allocation10] sm:$0xff] %v1205
    %1210 = vst [vmem:[#allocation10 + $0x8] sm:$0xff] %v1206
    %1211 = vst [vmem:[#allocation10 + $0x10] sm:$0xff] %v1207
    %1212 = vst [vmem:[#allocation10 + $0x18] sm:$0xff] %v1208
    // Predicated region
    $region38: #{tpu_custom_call.1} parent=1 // pred_check
      _
    $region39: #{tpu_custom_call.1} parent=1 // pred_check_branch
      %1214 = sbr.rel (0) target = $region41
    $region40: #{tpu_custom_call.1} parent=1 // pred_region
      %1216 = vsyncadd [#allocation4], 0
      %s1217 = sshll.u32 [#allocation10], 4
      %s1218 = int_to_ptr.vmem [resolvable:$true] %s1217
      %s1219 = sshll.u32 %s5, 4
      %s1220 = int_to_ptr.hbm [resolvable:$true] %s1219
      %1225 = dma.vmem_to_hbm [thread:$0]  %s1218, 512, %s1220, [#allocation4], 128, 128, 8
    $region41: #{tpu_custom_call.1} parent=1 // pred_fallthru
      _
    // Predicated region
    $region42: #{tpu_custom_call.1} parent=1 // pred_check
      _
    $region43: #{tpu_custom_call.1} parent=1 // pred_check_branch
      %1227 = sbr.rel (0) target = $region45
    $region44: #{tpu_custom_call.1} parent=1 // pred_region
      %1229 = dma.done [#allocation4], 512
    $region45: #{tpu_custom_call.1} parent=1 // pred_fallthru
      _
    %1230 = vsyncpa [#allocation3], 1
    %1231 = vsyncpa [#allocation6], 1
    %1232 = vsyncpa [#allocation9], 1
    %1233 = vsyncpa [#allocation4], 1

</llo_original>
